<compile_context>
chip_gen: v5e
topology: v5e:2x2
jax: 0.10.0
libtpu: 0.0.40
codegen_flags: <defaults>
</compile_context>

<pallas_src>
import functools
import numpy as np

import jax
import jax.numpy as jnp
from jax.experimental import pallas as pl
from jax.experimental.pallas import tpu as pltpu

LANES = 128

# ---- packed small-vector ("vecs") row layout -------------------------------
_V_INPROJ_B, _V_EMB_G, _V_EMB_B, _V_BEMB_G, _V_BEMB_B = 0, 1, 2, 3, 4
_V_P1_B, _V_PLN_G, _V_PLN_B, _V_P2_B = 5, 6, 7, 8
_V_V1_B, _V_VLN_G, _V_VLN_B, _V_V2_B = 9, 10, 11, 12
_V_NUM_GLOBAL = 13
_V_PER_LAYER = 8      # qkv_b, ao_b, attn_ln_g, attn_ln_b, i_b, o_b, out_ln_g, out_ln_b


def _round_up(n, m):
    return ((n + m - 1) // m) * m


def _gw_layout(D, H, H2):
    """Row offsets of the global weight slab (16-row aligned for bf16 packing)."""
    off_in = 0
    off_p1 = off_in + _round_up(D, 16)
    off_p2 = off_p1 + _round_up(H, 16)
    off_v1 = off_p2 + _round_up(H, 16)
    off_v2 = off_v1 + _round_up(H, 16)
    total = off_v2 + _round_up(H2, 16)
    return off_in, off_p1, off_p2, off_v1, off_v2, total


# --------------------------------------------------------------------------
# Fused forward kernel (one grid step == one batch group of Mg = (B/G)*S rows)
# --------------------------------------------------------------------------
def _fused_forward_kernel(x_ref, emb_ref, badd_ref, bias_ref, vecs_ref, gw_ref, lw_ref,
                          pol_ref, val_ref, *, D, H, I, H2, nH, dh, L):
    f32 = jnp.float32
    bf16 = jnp.bfloat16

    def vec(r, w):                       # one packed (1, w) bias / gamma / beta row
        return vecs_ref[r:r + 1, :w]

    def ln(x, g, b, eps):
        mu = jnp.mean(x, axis=-1, keepdims=True)
        var = jnp.mean(jnp.square(x - mu), axis=-1, keepdims=True)
        return (x - mu) * jax.lax.rsqrt(var + eps) * g + b

    def mm(a, w_bf16):                   # bf16 MXU GEMM, f32 accumulation
        return jnp.dot(a.astype(bf16), w_bf16, preferred_element_type=f32)

    off_in, off_p1, off_p2, off_v1, off_v2, _ = _gw_layout(D, H, H2)

    # ---- input projection + feature embeddings + learned positional enc ----
    h = mm(x_ref[...], gw_ref[off_in:off_in + D, :H]) + vec(_V_INPROJ_B, H)
    h = h + emb_ref[...]                             # player/pos/action/strategy + pos_encoder
    h = ln(h, vec(_V_EMB_G, H), vec(_V_EMB_B, H), 1e-5)          # embed_norm

    # ---- BERT embeddings layer (position emb + token-type emb + LN) ----
    h = h + badd_ref[...]
    h = ln(h, vec(_V_BEMB_G, H), vec(_V_BEMB_B, H), 1e-12)

    bias = bias_ref[...]                             # (Mg, Mg) additive attention bias
    scale = 1.0 / float(np.sqrt(dh))
    kt_dims = (((1,), (1,)), ((), ()))               # q @ k^T (contract last dims)

    # ---- BERT encoder layers (post-LN), statically unrolled ----
    for l in range(L):
        base = _V_NUM_GLOBAL + _V_PER_LAYER * l

        qkv = mm(h, lw_ref[l, 0:H, 0:3 * H]) + vec(base + 0, 3 * H)     # (Mg, 3H)
        q = qkv[:, 0:H] * scale
        k = qkv[:, H:2 * H]
        v = qkv[:, 2 * H:3 * H]

        # block-diagonal attention over all Mg rows of this group, per head
        ctx = []
        for hh in range(nH):
            c0, c1 = hh * dh, (hh + 1) * dh
            s = jax.lax.dot_general(q[:, c0:c1], k[:, c0:c1], kt_dims,
                                    preferred_element_type=f32) + bias
            m = jnp.max(s, axis=-1, keepdims=True)
            p = jnp.exp(s - m)
            p = p * pl.reciprocal(jnp.sum(p, axis=-1, keepdims=True), approx=False)
            ctx.append(jnp.dot(p, v[:, c0:c1], preferred_element_type=f32))
        ctx = jnp.concatenate(ctx, axis=-1)                              # (Mg, H)

        # single W_o GEMM per layer + add&LN
        attn = mm(ctx, lw_ref[l, H:2 * H, 0:H]) + vec(base + 1, H)
        h = ln(attn + h, vec(base + 2, H), vec(base + 3, H), 1e-12)

        # FFN + add&LN
        inter = mm(h, lw_ref[l, 2 * H:3 * H, 0:I]) + vec(base + 4, I)
        # TODO(synk): BERT uses exact erf-GELU; tanh-approximate GELU used here.
        inter = jax.nn.gelu(inter, approximate=True)
        ffo = mm(inter, lw_ref[l, 3 * H:3 * H + I, 0:H]) + vec(base + 5, H)
        h = ln(ffo + h, vec(base + 6, H), vec(base + 7, H), 1e-12)

    # ---- policy head (per row): Linear -> LayerNorm -> ReLU -> Linear ----
    p1 = mm(h, gw_ref[off_p1:off_p1 + H, :H]) + vec(_V_P1_B, H)
    p1 = jnp.maximum(ln(p1, vec(_V_PLN_G, H), vec(_V_PLN_B, H), 1e-5), 0.0)
    pol = mm(p1, gw_ref[off_p2:off_p2 + H, :]) + vec(_V_P2_B, LANES)     # lane-dense (Mg,128)
    pol_ref[...] = pol.astype(pol_ref.dtype)

    # ---- value head, computed per row (CLS rows are extracted outside) ----
    v1 = mm(h, gw_ref[off_v1:off_v1 + H, :H2]) + vec(_V_V1_B, H2)
    v1 = jnp.maximum(ln(v1, vec(_V_VLN_G, H2), vec(_V_VLN_B, H2), 1e-5), 0.0)
    val = jnp.tanh(mm(v1, gw_ref[off_v2:off_v2 + H2, :]) + vec(_V_V2_B, LANES))
    val_ref[...] = val.astype(val_ref.dtype)


# --------------------------------------------------------------------------
# Parameter construction (deterministic, xavier-uniform like the module init)
# --------------------------------------------------------------------------
def init_params(key, cfg):
    D = cfg["input_dim"]
    H = cfg["hidden_dim"]
    I = cfg["intermediate_dim"]
    MP = cfg["max_position_embeddings"]
    keys = iter(jax.random.split(key, 512))

    def xavier(shape):
        fan_in, fan_out = shape[0], shape[-1]
        limit = float(np.sqrt(6.0 / (fan_in + fan_out)))
        return jax.random.uniform(next(keys), shape, jnp.float32, -limit, limit)

    ones = lambda n: jnp.ones((n,), jnp.float32)
    zeros = lambda n: jnp.zeros((n,), jnp.float32)

    p = {
        "input_proj_w": xavier((D, H)), "input_proj_b": zeros(H),
        "player_emb": xavier((cfg["num_players"], H)),
        "position_emb": xavier((cfg["num_positions"], H)),
        "action_emb": xavier((cfg["num_actions"], H)),
        "strategy_emb": xavier((cfg["num_strategies"], H)),
        "embed_norm_g": ones(H), "embed_norm_b": zeros(H),
        "pos_encoder": jnp.zeros((1, MP, H), jnp.float32),  # torch init: zeros
        # BERT embeddings layer (inputs_embeds path)
        "bert_pos_emb": xavier((MP, H)),
        "bert_tok_emb": xavier((1, H)),
        "bert_emb_ln_g": ones(H), "bert_emb_ln_b": zeros(H),
        # policy head
        "p1_w": xavier((H, H)), "p1_b": zeros(H),
        "p_ln_g": ones(H), "p_ln_b": zeros(H),
        "p2_w": xavier((H, cfg["output_dim"])), "p2_b": zeros(cfg["output_dim"]),
        # value head
        "v1_w": xavier((H, H // 2)), "v1_b": zeros(H // 2),
        "v_ln_g": ones(H // 2), "v_ln_b": zeros(H // 2),
        "v2_w": xavier((H // 2, 1)), "v2_b": zeros(1),
    }

    layers = []
    for _ in range(cfg["num_layers"]):
        layers.append({
            "q_w": xavier((H, H)), "q_b": zeros(H),
            "k_w": xavier((H, H)), "k_b": zeros(H),
            "v_w": xavier((H, H)), "v_b": zeros(H),
            "ao_w": xavier((H, H)), "ao_b": zeros(H),
            "attn_ln_g": ones(H), "attn_ln_b": zeros(H),
            "i_w": xavier((H, I)), "i_b": zeros(I),
            "o_w": xavier((I, H)), "o_b": zeros(H),
            "out_ln_g": ones(H), "out_ln_b": zeros(H),
        })
    p["layers"] = layers
    return p


# --------------------------------------------------------------------------
# Forward wrapper: embedding gathers + weight packing in XLA, everything else
# in the single fused Pallas kernel (grid over batch groups).
# --------------------------------------------------------------------------
def forward(params, cfg, x, player_ids, positions, recent_actions, strategies,
            bluffing_probabilities, mask=None, groups=None):
    # bluffing_probabilities is accepted but unused, matching the PyTorch forward.
    B, S, D = x.shape
    H = cfg["hidden_dim"]
    nH = cfg["num_heads"]
    dh = H // nH
    H2 = H // 2
    OUT = cfg["output_dim"]
    I = cfg["intermediate_dim"]
    L = cfg["num_layers"]
    M = B * S
    f32 = jnp.float32

    assert 3 * H <= LANES and I <= LANES and OUT <= LANES and H2 <= LANES, \
        "weight packing assumes every matrix is at most 128 lanes wide"

    # grid over batch groups: 2 groups -> both TensorCores do work on dual-TC
    # chips (v7x); it is a plain 2-step sequential loop on single-TC v5e/v6e.
    if groups is None:
        groups = 2 if (B % 2 == 0 and B >= 2) else 1
    G = groups
    assert B % G == 0
    bpg = B // G
    Mg = bpg * S
    assert Mg % 8 == 0, "rows per grid step must be a multiple of 8"

    x2 = x.reshape(M, D).astype(f32)

    # Embedding-table gathers: data-dependent lookups on tiny tables -> XLA.
    emb_sum = (params["player_emb"][player_ids]
               + params["position_emb"][positions]
               + params["action_emb"][recent_actions]
               + params["strategy_emb"][strategies]
               + params["pos_encoder"][:, :S, :]).reshape(M, H).astype(f32)

    # BERT embeddings-layer additive term (position emb + token-type emb).
    bert_add = params["bert_pos_emb"][:S, :] + params["bert_tok_emb"][0][None, :]
    bert_add = jnp.broadcast_to(bert_add[None], (B, S, H)).reshape(M, H).astype(f32)

    # Block-diagonal additive attention bias per group: key-mask bias within a
    # batch, -1e9 on cross-batch (query,key) pairs (exp underflows to 0).
    if mask is None:
        mask = jnp.ones((B, S), f32)
    key_bias = (1.0 - mask.astype(f32)) * -10000.0                      # (B, S)
    key_bias = key_bias.reshape(G, Mg)                                  # keys per group
    row_batch = jnp.repeat(jnp.arange(bpg), S)                          # (Mg,)
    cross = jnp.where(row_batch[:, None] == row_batch[None, :], 0.0, -1e9)
    bias = (key_bias[:, None, :] + cross[None, :, :]).reshape(M, Mg)

    # ---- pack all small bias / LayerNorm vectors into ONE (R, 128) array ----
    def row(v):
        v = jnp.asarray(v, f32).reshape(-1)
        return jnp.pad(v, (0, LANES - v.shape[0]))

    rows = [params["input_proj_b"], params["embed_norm_g"], params["embed_norm_b"],
            params["bert_emb_ln_g"], params["bert_emb_ln_b"],
            params["p1_b"], params["p_ln_g"], params["p_ln_b"], params["p2_b"],
            params["v1_b"], params["v_ln_g"], params["v_ln_b"], params["v2_b"]]
    for lp in params["layers"]:
        rows += [jnp.concatenate([lp["q_b"], lp["k_b"], lp["v_b"]]),
                 lp["ao_b"], lp["attn_ln_g"], lp["attn_ln_b"],
                 lp["i_b"], lp["o_b"], lp["out_ln_g"], lp["out_ln_b"]]
    vecs = jnp.stack([row(r) for r in rows])
    vecs = jnp.pad(vecs, ((0, _round_up(vecs.shape[0], 8) - vecs.shape[0]), (0, 0)))

    # ---- pack weight matrices into two bf16 slabs (sublane-aligned, 128 lanes) ----
    def mat(w, rows_to):
        r, c = w.shape
        return jnp.pad(w, ((0, rows_to - r), (0, LANES - c)))

    off_in, off_p1, off_p2, off_v1, off_v2, gw_rows = _gw_layout(D, H, H2)
    gw = jnp.concatenate([
        mat(params["input_proj_w"], off_p1 - off_in),
        mat(params["p1_w"], off_p2 - off_p1),
        mat(params["p2_w"], off_v1 - off_p2),           # zero-padded to 128 lanes
        mat(params["v1_w"], off_v2 - off_v1),
        mat(params["v2_w"], gw_rows - off_v2),           # zero-padded to 128 lanes
    ], axis=0).astype(jnp.bfloat16)

    lws = []
    for lp in params["layers"]:
        qkvw = jnp.concatenate([lp["q_w"], lp["k_w"], lp["v_w"]], axis=1)   # (H, 3H)
        lws.append(jnp.concatenate([mat(qkvw, H), mat(lp["ao_w"], H),
                                    mat(lp["i_w"], H), mat(lp["o_w"], I)], axis=0))
    lw = jnp.stack(lws).astype(jnp.bfloat16)                                 # (L, 3H+I, 128)

    kernel = functools.partial(_fused_forward_kernel,
                               D=D, H=H, I=I, H2=H2, nH=nH, dh=dh, L=L)

    pol_pad, val_pad = pl.pallas_call(
        kernel,
        grid=(G,),
        out_shape=(jax.ShapeDtypeStruct((M, LANES), f32),
                   jax.ShapeDtypeStruct((M, LANES), f32)),
        in_specs=[
            pl.BlockSpec((Mg, D), lambda g: (g, 0)),          # x
            pl.BlockSpec((Mg, H), lambda g: (g, 0)),          # feature embeddings
            pl.BlockSpec((Mg, H), lambda g: (g, 0)),          # bert embeddings add
            pl.BlockSpec((Mg, Mg), lambda g: (g, 0)),         # attention bias
            pl.BlockSpec(vecs.shape, lambda g: (0, 0)),       # packed bias/LN vectors
            pl.BlockSpec(gw.shape, lambda g: (0, 0)),         # global weight slab
            pl.BlockSpec(lw.shape, lambda g: (0, 0, 0)),      # per-layer weight slab
        ],
        out_specs=(pl.BlockSpec((Mg, LANES), lambda g: (g, 0)),
                   pl.BlockSpec((Mg, LANES), lambda g: (g, 0))),
        compiler_params=pltpu.CompilerParams(
            dimension_semantics=("parallel",)),
    )(x2, emb_sum, bert_add, bias, vecs, gw, lw)

    policy_logits = pol_pad[:, :OUT].reshape(B, S, OUT)
    value_pred = val_pad[::S, 0:1]          # strided CLS-row extraction (batch b -> row b*S)
    return policy_logits, value_pred


# --------------------------------------------------------------------------
if __name__ == "__main__":
    cfg = dict(
        input_dim=52,
        hidden_dim=32,
        num_heads=4,
        num_layers=2,
        intermediate_dim=128,          # 4 * hidden_dim (TODO(synk): bert-base uses 3072)
        max_position_embeddings=16,
        num_players=6,
        num_positions=6,
        num_actions=3,
        num_strategies=3,
        output_dim=3,
    )

    root = jax.random.PRNGKey(0)
    pkey, dkey = jax.random.split(root)
    params = init_params(pkey, cfg)

    B, S = 2, 8
    kx, kp, kpos, ka, ks, kb = jax.random.split(dkey, 6)
    x = jax.random.normal(kx, (B, S, cfg["input_dim"]), jnp.float32)
    player_ids = jax.random.randint(kp, (B, S), 0, cfg["num_players"])
    positions = jax.random.randint(kpos, (B, S), 0, cfg["num_positions"])
    recent_actions = jax.random.randint(ka, (B, S), 0, cfg["num_actions"])
    strategies = jax.random.randint(ks, (B, S), 0, cfg["num_strategies"])
    bluffing = jax.random.uniform(kb, (B, S), jnp.float32)

    fwd = jax.jit(functools.partial(forward, params, cfg))
    policy_logits, value_pred = fwd(
        x, player_ids, positions, recent_actions, strategies, bluffing)
    jax.block_until_ready((policy_logits, value_pred))

    assert policy_logits.shape == (B, S, cfg["output_dim"])
    assert value_pred.shape == (B, 1)
    assert bool(jnp.all(jnp.isfinite(policy_logits)))
    assert bool(jnp.all(jnp.isfinite(value_pred)))
    print("KERNEL_OK")
</pallas_src>

<mosaic_0001>
module attributes {stable_mosaic.version = 11 : i64} {
  func.func @_fused_forward_kernel(%arg0: i32, %arg1: memref<8x52xf32, #tpu.memory_space<vmem>>, %arg2: memref<8x32xf32, #tpu.memory_space<vmem>>, %arg3: memref<8x32xf32, #tpu.memory_space<vmem>>, %arg4: memref<8x8xf32, #tpu.memory_space<vmem>>, %arg5: memref<32x128xf32, #tpu.memory_space<vmem>>, %arg6: memref<176x128xbf16, #tpu.memory_space<vmem>>, %arg7: memref<2x224x128xbf16, #tpu.memory_space<vmem>>, %arg8: memref<8x128xf32, #tpu.memory_space<vmem>>, %arg9: memref<8x128xf32, #tpu.memory_space<vmem>>) attributes {dimension_semantics = [#tpu.dimension_semantics<parallel>], iteration_bounds = array<i64: 2>, scalar_prefetch = 0 : i64, scratch_operands = 0 : i64, tpu.core_type = #tpu.core_type<tc>, window_params = [{transform_indices = @transform_0, window_bounds = array<i64: 8, 52>}, {transform_indices = @transform_1, window_bounds = array<i64: 8, 32>}, {transform_indices = @transform_2, window_bounds = array<i64: 8, 32>}, {transform_indices = @transform_3, window_bounds = array<i64: 8, 8>}, {pipeline_mode = #tpu.pipeline_mode<synchronous>, transform_indices = @transform_4, window_bounds = array<i64: 32, 128>}, {pipeline_mode = #tpu.pipeline_mode<synchronous>, transform_indices = @transform_5, window_bounds = array<i64: 176, 128>}, {pipeline_mode = #tpu.pipeline_mode<synchronous>, transform_indices = @transform_6, window_bounds = array<i64: 2, 224, 128>}, {transform_indices = @transform_7, window_bounds = array<i64: 8, 128>}, {transform_indices = @transform_8, window_bounds = array<i64: 8, 128>}]} {
    %c0 = arith.constant 0 : index
    %c0_0 = arith.constant 0 : index
    %0 = vector.load %arg1[%c0, %c0_0] : memref<8x52xf32, #tpu.memory_space<vmem>>, vector<8x52xf32>
    %c0_1 = arith.constant 0 : index
    %c0_2 = arith.constant 0 : index
    %1 = vector.load %arg6[%c0_1, %c0_2] : memref<176x128xbf16, #tpu.memory_space<vmem>>, vector<52x32xbf16>
    %2 = arith.truncf %0 : vector<8x52xf32> to vector<8x52xbf16>
    %cst = arith.constant dense<0.000000e+00> : vector<8x32xf32>
    %3 = tpu.matmul %2, %1, %cst {dimension_numbers = #tpu.dot_dimension_numbers<[1], [0], [0], [1], [0, 0, 1, 1], [], []>} : vector<8x52xbf16>, vector<52x32xbf16>, vector<8x32xf32> -> vector<8x32xf32>
    %c0_3 = arith.constant 0 : index
    %c0_4 = arith.constant 0 : index
    %4 = vector.load %arg5[%c0_3, %c0_4] : memref<32x128xf32, #tpu.memory_space<vmem>>, vector<1x32xf32>
    %5 = vector.broadcast %4 : vector<1x32xf32> to vector<8x32xf32>
    %6 = arith.addf %3, %5 : vector<8x32xf32>
    %c0_5 = arith.constant 0 : index
    %c0_6 = arith.constant 0 : index
    %7 = vector.load %arg2[%c0_5, %c0_6] : memref<8x32xf32, #tpu.memory_space<vmem>>, vector<8x32xf32>
    %8 = arith.addf %6, %7 : vector<8x32xf32>
    %c1 = arith.constant 1 : index
    %c0_7 = arith.constant 0 : index
    %9 = vector.load %arg5[%c1, %c0_7] : memref<32x128xf32, #tpu.memory_space<vmem>>, vector<1x32xf32>
    %c2 = arith.constant 2 : index
    %c0_8 = arith.constant 0 : index
    %10 = vector.load %arg5[%c2, %c0_8] : memref<32x128xf32, #tpu.memory_space<vmem>>, vector<1x32xf32>
    %cst_9 = arith.constant dense<0.000000e+00> : vector<8xf32>
    %11 = vector.multi_reduction <add>, %8, %cst_9 [1] : vector<8x32xf32> to vector<8xf32>
    %12 = vector.shape_cast %11 : vector<8xf32> to vector<8x1xf32>
    %cst_10 = arith.constant 3.200000e+01 : f32
    %13 = vector.broadcast %cst_10 : f32 to vector<8x1xf32>
    %14 = arith.divf %12, %13 : vector<8x1xf32>
    %15 = vector.broadcast %14 : vector<8x1xf32> to vector<8x32xf32>
    %16 = arith.subf %8, %15 : vector<8x32xf32>
    %17 = arith.mulf %16, %16 : vector<8x32xf32>
    %cst_11 = arith.constant dense<0.000000e+00> : vector<8xf32>
    %18 = vector.multi_reduction <add>, %17, %cst_11 [1] : vector<8x32xf32> to vector<8xf32>
    %19 = vector.shape_cast %18 : vector<8xf32> to vector<8x1xf32>
    %cst_12 = arith.constant 3.200000e+01 : f32
    %20 = vector.broadcast %cst_12 : f32 to vector<8x1xf32>
    %21 = arith.divf %19, %20 : vector<8x1xf32>
    %22 = vector.broadcast %14 : vector<8x1xf32> to vector<8x32xf32>
    %23 = arith.subf %8, %22 : vector<8x32xf32>
    %cst_13 = arith.constant 9.99999974E-6 : f32
    %24 = vector.broadcast %cst_13 : f32 to vector<8x1xf32>
    %25 = arith.addf %21, %24 : vector<8x1xf32>
    %26 = math.rsqrt %25 : vector<8x1xf32>
    %27 = vector.broadcast %26 : vector<8x1xf32> to vector<8x32xf32>
    %28 = arith.mulf %23, %27 : vector<8x32xf32>
    %29 = vector.broadcast %9 : vector<1x32xf32> to vector<8x32xf32>
    %30 = arith.mulf %28, %29 : vector<8x32xf32>
    %31 = vector.broadcast %10 : vector<1x32xf32> to vector<8x32xf32>
    %32 = arith.addf %30, %31 : vector<8x32xf32>
    %c0_14 = arith.constant 0 : index
    %c0_15 = arith.constant 0 : index
    %33 = vector.load %arg3[%c0_14, %c0_15] : memref<8x32xf32, #tpu.memory_space<vmem>>, vector<8x32xf32>
    %34 = arith.addf %32, %33 : vector<8x32xf32>
    %c3 = arith.constant 3 : index
    %c0_16 = arith.constant 0 : index
    %35 = vector.load %arg5[%c3, %c0_16] : memref<32x128xf32, #tpu.memory_space<vmem>>, vector<1x32xf32>
    %c4 = arith.constant 4 : index
    %c0_17 = arith.constant 0 : index
    %36 = vector.load %arg5[%c4, %c0_17] : memref<32x128xf32, #tpu.memory_space<vmem>>, vector<1x32xf32>
    %cst_18 = arith.constant dense<0.000000e+00> : vector<8xf32>
    %37 = vector.multi_reduction <add>, %34, %cst_18 [1] : vector<8x32xf32> to vector<8xf32>
    %38 = vector.shape_cast %37 : vector<8xf32> to vector<8x1xf32>
    %cst_19 = arith.constant 3.200000e+01 : f32
    %39 = vector.broadcast %cst_19 : f32 to vector<8x1xf32>
    %40 = arith.divf %38, %39 : vector<8x1xf32>
    %41 = vector.broadcast %40 : vector<8x1xf32> to vector<8x32xf32>
    %42 = arith.subf %34, %41 : vector<8x32xf32>
    %43 = arith.mulf %42, %42 : vector<8x32xf32>
    %cst_20 = arith.constant dense<0.000000e+00> : vector<8xf32>
    %44 = vector.multi_reduction <add>, %43, %cst_20 [1] : vector<8x32xf32> to vector<8xf32>
    %45 = vector.shape_cast %44 : vector<8xf32> to vector<8x1xf32>
    %cst_21 = arith.constant 3.200000e+01 : f32
    %46 = vector.broadcast %cst_21 : f32 to vector<8x1xf32>
    %47 = arith.divf %45, %46 : vector<8x1xf32>
    %48 = vector.broadcast %40 : vector<8x1xf32> to vector<8x32xf32>
    %49 = arith.subf %34, %48 : vector<8x32xf32>
    %cst_22 = arith.constant 9.99999996E-13 : f32
    %50 = vector.broadcast %cst_22 : f32 to vector<8x1xf32>
    %51 = arith.addf %47, %50 : vector<8x1xf32>
    %52 = math.rsqrt %51 : vector<8x1xf32>
    %53 = vector.broadcast %52 : vector<8x1xf32> to vector<8x32xf32>
    %54 = arith.mulf %49, %53 : vector<8x32xf32>
    %55 = vector.broadcast %35 : vector<1x32xf32> to vector<8x32xf32>
    %56 = arith.mulf %54, %55 : vector<8x32xf32>
    %57 = vector.broadcast %36 : vector<1x32xf32> to vector<8x32xf32>
    %58 = arith.addf %56, %57 : vector<8x32xf32>
    %c0_23 = arith.constant 0 : index
    %c0_24 = arith.constant 0 : index
    %59 = vector.load %arg4[%c0_23, %c0_24] : memref<8x8xf32, #tpu.memory_space<vmem>>, vector<8x8xf32>
    %c0_25 = arith.constant 0 : index
    %c0_26 = arith.constant 0 : index
    %c0_27 = arith.constant 0 : index
    %60 = vector.load %arg7[%c0_25, %c0_26, %c0_27] : memref<2x224x128xbf16, #tpu.memory_space<vmem>>, vector<1x32x96xbf16>
    %61 = vector.shape_cast %60 : vector<1x32x96xbf16> to vector<32x96xbf16>
    %62 = arith.truncf %58 : vector<8x32xf32> to vector<8x32xbf16>
    %cst_28 = arith.constant dense<0.000000e+00> : vector<8x96xf32>
    %63 = tpu.matmul %62, %61, %cst_28 {dimension_numbers = #tpu.dot_dimension_numbers<[1], [0], [0], [1], [0, 0, 1, 1], [], []>} : vector<8x32xbf16>, vector<32x96xbf16>, vector<8x96xf32> -> vector<8x96xf32>
    %c13 = arith.constant 13 : index
    %c0_29 = arith.constant 0 : index
    %64 = vector.load %arg5[%c13, %c0_29] : memref<32x128xf32, #tpu.memory_space<vmem>>, vector<1x96xf32>
    %65 = vector.broadcast %64 : vector<1x96xf32> to vector<8x96xf32>
    %66 = arith.addf %63, %65 : vector<8x96xf32>
    %67 = vector.extract_strided_slice %66 {offsets = [0, 0], sizes = [8, 32], strides = [1, 1]} : vector<8x96xf32> to vector<8x32xf32>
    %cst_30 = arith.constant 0.353553385 : f32
    %68 = vector.broadcast %cst_30 : f32 to vector<8x32xf32>
    %69 = arith.mulf %67, %68 : vector<8x32xf32>
    %70 = vector.extract_strided_slice %66 {offsets = [0, 32], sizes = [8, 32], strides = [1, 1]} : vector<8x96xf32> to vector<8x32xf32>
    %71 = vector.extract_strided_slice %66 {offsets = [0, 64], sizes = [8, 32], strides = [1, 1]} : vector<8x96xf32> to vector<8x32xf32>
    %72 = vector.extract_strided_slice %69 {offsets = [0, 0], sizes = [8, 8], strides = [1, 1]} : vector<8x32xf32> to vector<8x8xf32>
    %73 = vector.extract_strided_slice %70 {offsets = [0, 0], sizes = [8, 8], strides = [1, 1]} : vector<8x32xf32> to vector<8x8xf32>
    %cst_31 = arith.constant dense<0.000000e+00> : vector<8x8xf32>
    %74 = tpu.matmul %72, %73, %cst_31 {dimension_numbers = #tpu.dot_dimension_numbers<[1], [1], [0], [0], [0, 0, 1, 0], [], []>} : vector<8x8xf32>, vector<8x8xf32>, vector<8x8xf32> -> vector<8x8xf32>
    %75 = arith.addf %74, %59 : vector<8x8xf32>
    %cst_32 = arith.constant dense<0xFF800000> : vector<8xf32>
    %76 = vector.multi_reduction <maximumf>, %75, %cst_32 [1] : vector<8x8xf32> to vector<8xf32>
    %77 = vector.shape_cast %76 : vector<8xf32> to vector<8x1xf32>
    %78 = vector.broadcast %77 : vector<8x1xf32> to vector<8x8xf32>
    %79 = arith.subf %75, %78 : vector<8x8xf32>
    %80 = math.exp %79 : vector<8x8xf32>
    %cst_33 = arith.constant dense<0.000000e+00> : vector<8xf32>
    %81 = vector.multi_reduction <add>, %80, %cst_33 [1] : vector<8x8xf32> to vector<8xf32>
    %82 = vector.shape_cast %81 : vector<8xf32> to vector<8x1xf32>
    %83 = tpu.reciprocal %82 : vector<8x1xf32> -> vector<8x1xf32>
    %84 = vector.broadcast %83 : vector<8x1xf32> to vector<8x8xf32>
    %85 = arith.mulf %80, %84 : vector<8x8xf32>
    %86 = vector.extract_strided_slice %71 {offsets = [0, 0], sizes = [8, 8], strides = [1, 1]} : vector<8x32xf32> to vector<8x8xf32>
    %cst_34 = arith.constant dense<0.000000e+00> : vector<8x8xf32>
    %87 = tpu.matmul %85, %86, %cst_34 {dimension_numbers = #tpu.dot_dimension_numbers<[1], [0], [0], [1], [0, 0, 1, 1], [], []>} : vector<8x8xf32>, vector<8x8xf32>, vector<8x8xf32> -> vector<8x8xf32>
    %88 = vector.extract_strided_slice %69 {offsets = [0, 8], sizes = [8, 8], strides = [1, 1]} : vector<8x32xf32> to vector<8x8xf32>
    %89 = vector.extract_strided_slice %70 {offsets = [0, 8], sizes = [8, 8], strides = [1, 1]} : vector<8x32xf32> to vector<8x8xf32>
    %cst_35 = arith.constant dense<0.000000e+00> : vector<8x8xf32>
    %90 = tpu.matmul %88, %89, %cst_35 {dimension_numbers = #tpu.dot_dimension_numbers<[1], [1], [0], [0], [0, 0, 1, 0], [], []>} : vector<8x8xf32>, vector<8x8xf32>, vector<8x8xf32> -> vector<8x8xf32>
    %91 = arith.addf %90, %59 : vector<8x8xf32>
    %cst_36 = arith.constant dense<0xFF800000> : vector<8xf32>
    %92 = vector.multi_reduction <maximumf>, %91, %cst_36 [1] : vector<8x8xf32> to vector<8xf32>
    %93 = vector.shape_cast %92 : vector<8xf32> to vector<8x1xf32>
    %94 = vector.broadcast %93 : vector<8x1xf32> to vector<8x8xf32>
    %95 = arith.subf %91, %94 : vector<8x8xf32>
    %96 = math.exp %95 : vector<8x8xf32>
    %cst_37 = arith.constant dense<0.000000e+00> : vector<8xf32>
    %97 = vector.multi_reduction <add>, %96, %cst_37 [1] : vector<8x8xf32> to vector<8xf32>
    %98 = vector.shape_cast %97 : vector<8xf32> to vector<8x1xf32>
    %99 = tpu.reciprocal %98 : vector<8x1xf32> -> vector<8x1xf32>
    %100 = vector.broadcast %99 : vector<8x1xf32> to vector<8x8xf32>
    %101 = arith.mulf %96, %100 : vector<8x8xf32>
    %102 = vector.extract_strided_slice %71 {offsets = [0, 8], sizes = [8, 8], strides = [1, 1]} : vector<8x32xf32> to vector<8x8xf32>
    %cst_38 = arith.constant dense<0.000000e+00> : vector<8x8xf32>
    %103 = tpu.matmul %101, %102, %cst_38 {dimension_numbers = #tpu.dot_dimension_numbers<[1], [0], [0], [1], [0, 0, 1, 1], [], []>} : vector<8x8xf32>, vector<8x8xf32>, vector<8x8xf32> -> vector<8x8xf32>
    %104 = vector.extract_strided_slice %69 {offsets = [0, 16], sizes = [8, 8], strides = [1, 1]} : vector<8x32xf32> to vector<8x8xf32>
    %105 = vector.extract_strided_slice %70 {offsets = [0, 16], sizes = [8, 8], strides = [1, 1]} : vector<8x32xf32> to vector<8x8xf32>
    %cst_39 = arith.constant dense<0.000000e+00> : vector<8x8xf32>
    %106 = tpu.matmul %104, %105, %cst_39 {dimension_numbers = #tpu.dot_dimension_numbers<[1], [1], [0], [0], [0, 0, 1, 0], [], []>} : vector<8x8xf32>, vector<8x8xf32>, vector<8x8xf32> -> vector<8x8xf32>
    %107 = arith.addf %106, %59 : vector<8x8xf32>
    %cst_40 = arith.constant dense<0xFF800000> : vector<8xf32>
    %108 = vector.multi_reduction <maximumf>, %107, %cst_40 [1] : vector<8x8xf32> to vector<8xf32>
    %109 = vector.shape_cast %108 : vector<8xf32> to vector<8x1xf32>
    %110 = vector.broadcast %109 : vector<8x1xf32> to vector<8x8xf32>
    %111 = arith.subf %107, %110 : vector<8x8xf32>
    %112 = math.exp %111 : vector<8x8xf32>
    %cst_41 = arith.constant dense<0.000000e+00> : vector<8xf32>
    %113 = vector.multi_reduction <add>, %112, %cst_41 [1] : vector<8x8xf32> to vector<8xf32>
    %114 = vector.shape_cast %113 : vector<8xf32> to vector<8x1xf32>
    %115 = tpu.reciprocal %114 : vector<8x1xf32> -> vector<8x1xf32>
    %116 = vector.broadcast %115 : vector<8x1xf32> to vector<8x8xf32>
    %117 = arith.mulf %112, %116 : vector<8x8xf32>
    %118 = vector.extract_strided_slice %71 {offsets = [0, 16], sizes = [8, 8], strides = [1, 1]} : vector<8x32xf32> to vector<8x8xf32>
    %cst_42 = arith.constant dense<0.000000e+00> : vector<8x8xf32>
    %119 = tpu.matmul %117, %118, %cst_42 {dimension_numbers = #tpu.dot_dimension_numbers<[1], [0], [0], [1], [0, 0, 1, 1], [], []>} : vector<8x8xf32>, vector<8x8xf32>, vector<8x8xf32> -> vector<8x8xf32>
    %120 = vector.extract_strided_slice %69 {offsets = [0, 24], sizes = [8, 8], strides = [1, 1]} : vector<8x32xf32> to vector<8x8xf32>
    %121 = vector.extract_strided_slice %70 {offsets = [0, 24], sizes = [8, 8], strides = [1, 1]} : vector<8x32xf32> to vector<8x8xf32>
    %cst_43 = arith.constant dense<0.000000e+00> : vector<8x8xf32>
    %122 = tpu.matmul %120, %121, %cst_43 {dimension_numbers = #tpu.dot_dimension_numbers<[1], [1], [0], [0], [0, 0, 1, 0], [], []>} : vector<8x8xf32>, vector<8x8xf32>, vector<8x8xf32> -> vector<8x8xf32>
    %123 = arith.addf %122, %59 : vector<8x8xf32>
    %cst_44 = arith.constant dense<0xFF800000> : vector<8xf32>
    %124 = vector.multi_reduction <maximumf>, %123, %cst_44 [1] : vector<8x8xf32> to vector<8xf32>
    %125 = vector.shape_cast %124 : vector<8xf32> to vector<8x1xf32>
    %126 = vector.broadcast %125 : vector<8x1xf32> to vector<8x8xf32>
    %127 = arith.subf %123, %126 : vector<8x8xf32>
    %128 = math.exp %127 : vector<8x8xf32>
    %cst_45 = arith.constant dense<0.000000e+00> : vector<8xf32>
    %129 = vector.multi_reduction <add>, %128, %cst_45 [1] : vector<8x8xf32> to vector<8xf32>
    %130 = vector.shape_cast %129 : vector<8xf32> to vector<8x1xf32>
    %131 = tpu.reciprocal %130 : vector<8x1xf32> -> vector<8x1xf32>
    %132 = vector.broadcast %131 : vector<8x1xf32> to vector<8x8xf32>
    %133 = arith.mulf %128, %132 : vector<8x8xf32>
    %134 = vector.extract_strided_slice %71 {offsets = [0, 24], sizes = [8, 8], strides = [1, 1]} : vector<8x32xf32> to vector<8x8xf32>
    %cst_46 = arith.constant dense<0.000000e+00> : vector<8x8xf32>
    %135 = tpu.matmul %133, %134, %cst_46 {dimension_numbers = #tpu.dot_dimension_numbers<[1], [0], [0], [1], [0, 0, 1, 1], [], []>} : vector<8x8xf32>, vector<8x8xf32>, vector<8x8xf32> -> vector<8x8xf32>
    %136 = tpu.concatenate %87, %103, %119, %135 in 1 : vector<8x8xf32>, vector<8x8xf32>, vector<8x8xf32>, vector<8x8xf32> -> vector<8x32xf32>
    %c0_47 = arith.constant 0 : index
    %c32 = arith.constant 32 : index
    %c0_48 = arith.constant 0 : index
    %137 = vector.load %arg7[%c0_47, %c32, %c0_48] : memref<2x224x128xbf16, #tpu.memory_space<vmem>>, vector<1x32x32xbf16>
    %138 = vector.shape_cast %137 : vector<1x32x32xbf16> to vector<32x32xbf16>
    %139 = arith.truncf %136 : vector<8x32xf32> to vector<8x32xbf16>
    %cst_49 = arith.constant dense<0.000000e+00> : vector<8x32xf32>
    %140 = tpu.matmul %139, %138, %cst_49 {dimension_numbers = #tpu.dot_dimension_numbers<[1], [0], [0], [1], [0, 0, 1, 1], [], []>} : vector<8x32xbf16>, vector<32x32xbf16>, vector<8x32xf32> -> vector<8x32xf32>
    %c14 = arith.constant 14 : index
    %c0_50 = arith.constant 0 : index
    %141 = vector.load %arg5[%c14, %c0_50] : memref<32x128xf32, #tpu.memory_space<vmem>>, vector<1x32xf32>
    %142 = vector.broadcast %141 : vector<1x32xf32> to vector<8x32xf32>
    %143 = arith.addf %140, %142 : vector<8x32xf32>
    %144 = arith.addf %143, %58 : vector<8x32xf32>
    %c15 = arith.constant 15 : index
    %c0_51 = arith.constant 0 : index
    %145 = vector.load %arg5[%c15, %c0_51] : memref<32x128xf32, #tpu.memory_space<vmem>>, vector<1x32xf32>
    %c16 = arith.constant 16 : index
    %c0_52 = arith.constant 0 : index
    %146 = vector.load %arg5[%c16, %c0_52] : memref<32x128xf32, #tpu.memory_space<vmem>>, vector<1x32xf32>
    %cst_53 = arith.constant dense<0.000000e+00> : vector<8xf32>
    %147 = vector.multi_reduction <add>, %144, %cst_53 [1] : vector<8x32xf32> to vector<8xf32>
    %148 = vector.shape_cast %147 : vector<8xf32> to vector<8x1xf32>
    %cst_54 = arith.constant 3.200000e+01 : f32
    %149 = vector.broadcast %cst_54 : f32 to vector<8x1xf32>
    %150 = arith.divf %148, %149 : vector<8x1xf32>
    %151 = vector.broadcast %150 : vector<8x1xf32> to vector<8x32xf32>
    %152 = arith.subf %144, %151 : vector<8x32xf32>
    %153 = arith.mulf %152, %152 : vector<8x32xf32>
    %cst_55 = arith.constant dense<0.000000e+00> : vector<8xf32>
    %154 = vector.multi_reduction <add>, %153, %cst_55 [1] : vector<8x32xf32> to vector<8xf32>
    %155 = vector.shape_cast %154 : vector<8xf32> to vector<8x1xf32>
    %cst_56 = arith.constant 3.200000e+01 : f32
    %156 = vector.broadcast %cst_56 : f32 to vector<8x1xf32>
    %157 = arith.divf %155, %156 : vector<8x1xf32>
    %158 = vector.broadcast %150 : vector<8x1xf32> to vector<8x32xf32>
    %159 = arith.subf %144, %158 : vector<8x32xf32>
    %cst_57 = arith.constant 9.99999996E-13 : f32
    %160 = vector.broadcast %cst_57 : f32 to vector<8x1xf32>
    %161 = arith.addf %157, %160 : vector<8x1xf32>
    %162 = math.rsqrt %161 : vector<8x1xf32>
    %163 = vector.broadcast %162 : vector<8x1xf32> to vector<8x32xf32>
    %164 = arith.mulf %159, %163 : vector<8x32xf32>
    %165 = vector.broadcast %145 : vector<1x32xf32> to vector<8x32xf32>
    %166 = arith.mulf %164, %165 : vector<8x32xf32>
    %167 = vector.broadcast %146 : vector<1x32xf32> to vector<8x32xf32>
    %168 = arith.addf %166, %167 : vector<8x32xf32>
    %c0_58 = arith.constant 0 : index
    %c64 = arith.constant 64 : index
    %c0_59 = arith.constant 0 : index
    %169 = vector.load %arg7[%c0_58, %c64, %c0_59] : memref<2x224x128xbf16, #tpu.memory_space<vmem>>, vector<1x32x128xbf16>
    %170 = vector.shape_cast %169 : vector<1x32x128xbf16> to vector<32x128xbf16>
    %171 = arith.truncf %168 : vector<8x32xf32> to vector<8x32xbf16>
    %cst_60 = arith.constant dense<0.000000e+00> : vector<8x128xf32>
    %172 = tpu.matmul %171, %170, %cst_60 {dimension_numbers = #tpu.dot_dimension_numbers<[1], [0], [0], [1], [0, 0, 1, 1], [], []>} : vector<8x32xbf16>, vector<32x128xbf16>, vector<8x128xf32> -> vector<8x128xf32>
    %c17 = arith.constant 17 : index
    %c0_61 = arith.constant 0 : index
    %173 = vector.load %arg5[%c17, %c0_61] : memref<32x128xf32, #tpu.memory_space<vmem>>, vector<1x128xf32>
    %174 = vector.broadcast %173 : vector<1x128xf32> to vector<8x128xf32>
    %175 = arith.addf %172, %174 : vector<8x128xf32>
    %176 = arith.mulf %175, %175 : vector<8x128xf32>
    %177 = arith.mulf %175, %176 : vector<8x128xf32>
    %cst_62 = arith.constant 4.471500e-02 : f32
    %178 = vector.broadcast %cst_62 : f32 to vector<8x128xf32>
    %179 = arith.mulf %178, %177 : vector<8x128xf32>
    %180 = arith.addf %175, %179 : vector<8x128xf32>
    %cst_63 = arith.constant 0.797884583 : f32
    %181 = vector.broadcast %cst_63 : f32 to vector<8x128xf32>
    %182 = arith.mulf %181, %180 : vector<8x128xf32>
    %183 = math.tanh %182 : vector<8x128xf32>
    %cst_64 = arith.constant 1.000000e+00 : f32
    %184 = vector.broadcast %cst_64 : f32 to vector<8x128xf32>
    %185 = arith.addf %184, %183 : vector<8x128xf32>
    %cst_65 = arith.constant 5.000000e-01 : f32
    %186 = vector.broadcast %cst_65 : f32 to vector<8x128xf32>
    %187 = arith.mulf %186, %185 : vector<8x128xf32>
    %188 = arith.mulf %175, %187 : vector<8x128xf32>
    %c0_66 = arith.constant 0 : index
    %c96 = arith.constant 96 : index
    %c0_67 = arith.constant 0 : index
    %189 = vector.load %arg7[%c0_66, %c96, %c0_67] : memref<2x224x128xbf16, #tpu.memory_space<vmem>>, vector<1x128x32xbf16>
    %190 = vector.shape_cast %189 : vector<1x128x32xbf16> to vector<128x32xbf16>
    %191 = arith.truncf %188 : vector<8x128xf32> to vector<8x128xbf16>
    %cst_68 = arith.constant dense<0.000000e+00> : vector<8x32xf32>
    %192 = tpu.matmul %191, %190, %cst_68 {dimension_numbers = #tpu.dot_dimension_numbers<[1], [0], [0], [1], [0, 0, 1, 1], [], []>} : vector<8x128xbf16>, vector<128x32xbf16>, vector<8x32xf32> -> vector<8x32xf32>
    %c18 = arith.constant 18 : index
    %c0_69 = arith.constant 0 : index
    %193 = vector.load %arg5[%c18, %c0_69] : memref<32x128xf32, #tpu.memory_space<vmem>>, vector<1x32xf32>
    %194 = vector.broadcast %193 : vector<1x32xf32> to vector<8x32xf32>
    %195 = arith.addf %192, %194 : vector<8x32xf32>
    %196 = arith.addf %195, %168 : vector<8x32xf32>
    %c19 = arith.constant 19 : index
    %c0_70 = arith.constant 0 : index
    %197 = vector.load %arg5[%c19, %c0_70] : memref<32x128xf32, #tpu.memory_space<vmem>>, vector<1x32xf32>
    %c20 = arith.constant 20 : index
    %c0_71 = arith.constant 0 : index
    %198 = vector.load %arg5[%c20, %c0_71] : memref<32x128xf32, #tpu.memory_space<vmem>>, vector<1x32xf32>
    %cst_72 = arith.constant dense<0.000000e+00> : vector<8xf32>
    %199 = vector.multi_reduction <add>, %196, %cst_72 [1] : vector<8x32xf32> to vector<8xf32>
    %200 = vector.shape_cast %199 : vector<8xf32> to vector<8x1xf32>
    %cst_73 = arith.constant 3.200000e+01 : f32
    %201 = vector.broadcast %cst_73 : f32 to vector<8x1xf32>
    %202 = arith.divf %200, %201 : vector<8x1xf32>
    %203 = vector.broadcast %202 : vector<8x1xf32> to vector<8x32xf32>
    %204 = arith.subf %196, %203 : vector<8x32xf32>
    %205 = arith.mulf %204, %204 : vector<8x32xf32>
    %cst_74 = arith.constant dense<0.000000e+00> : vector<8xf32>
    %206 = vector.multi_reduction <add>, %205, %cst_74 [1] : vector<8x32xf32> to vector<8xf32>
    %207 = vector.shape_cast %206 : vector<8xf32> to vector<8x1xf32>
    %cst_75 = arith.constant 3.200000e+01 : f32
    %208 = vector.broadcast %cst_75 : f32 to vector<8x1xf32>
    %209 = arith.divf %207, %208 : vector<8x1xf32>
    %210 = vector.broadcast %202 : vector<8x1xf32> to vector<8x32xf32>
    %211 = arith.subf %196, %210 : vector<8x32xf32>
    %cst_76 = arith.constant 9.99999996E-13 : f32
    %212 = vector.broadcast %cst_76 : f32 to vector<8x1xf32>
    %213 = arith.addf %209, %212 : vector<8x1xf32>
    %214 = math.rsqrt %213 : vector<8x1xf32>
    %215 = vector.broadcast %214 : vector<8x1xf32> to vector<8x32xf32>
    %216 = arith.mulf %211, %215 : vector<8x32xf32>
    %217 = vector.broadcast %197 : vector<1x32xf32> to vector<8x32xf32>
    %218 = arith.mulf %216, %217 : vector<8x32xf32>
    %219 = vector.broadcast %198 : vector<1x32xf32> to vector<8x32xf32>
    %220 = arith.addf %218, %219 : vector<8x32xf32>
    %c1_77 = arith.constant 1 : index
    %c0_78 = arith.constant 0 : index
    %c0_79 = arith.constant 0 : index
    %221 = vector.load %arg7[%c1_77, %c0_78, %c0_79] : memref<2x224x128xbf16, #tpu.memory_space<vmem>>, vector<1x32x96xbf16>
    %222 = vector.shape_cast %221 : vector<1x32x96xbf16> to vector<32x96xbf16>
    %223 = arith.truncf %220 : vector<8x32xf32> to vector<8x32xbf16>
    %cst_80 = arith.constant dense<0.000000e+00> : vector<8x96xf32>
    %224 = tpu.matmul %223, %222, %cst_80 {dimension_numbers = #tpu.dot_dimension_numbers<[1], [0], [0], [1], [0, 0, 1, 1], [], []>} : vector<8x32xbf16>, vector<32x96xbf16>, vector<8x96xf32> -> vector<8x96xf32>
    %c21 = arith.constant 21 : index
    %c0_81 = arith.constant 0 : index
    %225 = vector.load %arg5[%c21, %c0_81] : memref<32x128xf32, #tpu.memory_space<vmem>>, vector<1x96xf32>
    %226 = vector.broadcast %225 : vector<1x96xf32> to vector<8x96xf32>
    %227 = arith.addf %224, %226 : vector<8x96xf32>
    %228 = vector.extract_strided_slice %227 {offsets = [0, 0], sizes = [8, 32], strides = [1, 1]} : vector<8x96xf32> to vector<8x32xf32>
    %cst_82 = arith.constant 0.353553385 : f32
    %229 = vector.broadcast %cst_82 : f32 to vector<8x32xf32>
    %230 = arith.mulf %228, %229 : vector<8x32xf32>
    %231 = vector.extract_strided_slice %227 {offsets = [0, 32], sizes = [8, 32], strides = [1, 1]} : vector<8x96xf32> to vector<8x32xf32>
    %232 = vector.extract_strided_slice %227 {offsets = [0, 64], sizes = [8, 32], strides = [1, 1]} : vector<8x96xf32> to vector<8x32xf32>
    %233 = vector.extract_strided_slice %230 {offsets = [0, 0], sizes = [8, 8], strides = [1, 1]} : vector<8x32xf32> to vector<8x8xf32>
    %234 = vector.extract_strided_slice %231 {offsets = [0, 0], sizes = [8, 8], strides = [1, 1]} : vector<8x32xf32> to vector<8x8xf32>
    %cst_83 = arith.constant dense<0.000000e+00> : vector<8x8xf32>
    %235 = tpu.matmul %233, %234, %cst_83 {dimension_numbers = #tpu.dot_dimension_numbers<[1], [1], [0], [0], [0, 0, 1, 0], [], []>} : vector<8x8xf32>, vector<8x8xf32>, vector<8x8xf32> -> vector<8x8xf32>
    %236 = arith.addf %235, %59 : vector<8x8xf32>
    %cst_84 = arith.constant dense<0xFF800000> : vector<8xf32>
    %237 = vector.multi_reduction <maximumf>, %236, %cst_84 [1] : vector<8x8xf32> to vector<8xf32>
    %238 = vector.shape_cast %237 : vector<8xf32> to vector<8x1xf32>
    %239 = vector.broadcast %238 : vector<8x1xf32> to vector<8x8xf32>
    %240 = arith.subf %236, %239 : vector<8x8xf32>
    %241 = math.exp %240 : vector<8x8xf32>
    %cst_85 = arith.constant dense<0.000000e+00> : vector<8xf32>
    %242 = vector.multi_reduction <add>, %241, %cst_85 [1] : vector<8x8xf32> to vector<8xf32>
    %243 = vector.shape_cast %242 : vector<8xf32> to vector<8x1xf32>
    %244 = tpu.reciprocal %243 : vector<8x1xf32> -> vector<8x1xf32>
    %245 = vector.broadcast %244 : vector<8x1xf32> to vector<8x8xf32>
    %246 = arith.mulf %241, %245 : vector<8x8xf32>
    %247 = vector.extract_strided_slice %232 {offsets = [0, 0], sizes = [8, 8], strides = [1, 1]} : vector<8x32xf32> to vector<8x8xf32>
    %cst_86 = arith.constant dense<0.000000e+00> : vector<8x8xf32>
    %248 = tpu.matmul %246, %247, %cst_86 {dimension_numbers = #tpu.dot_dimension_numbers<[1], [0], [0], [1], [0, 0, 1, 1], [], []>} : vector<8x8xf32>, vector<8x8xf32>, vector<8x8xf32> -> vector<8x8xf32>
    %249 = vector.extract_strided_slice %230 {offsets = [0, 8], sizes = [8, 8], strides = [1, 1]} : vector<8x32xf32> to vector<8x8xf32>
    %250 = vector.extract_strided_slice %231 {offsets = [0, 8], sizes = [8, 8], strides = [1, 1]} : vector<8x32xf32> to vector<8x8xf32>
    %cst_87 = arith.constant dense<0.000000e+00> : vector<8x8xf32>
    %251 = tpu.matmul %249, %250, %cst_87 {dimension_numbers = #tpu.dot_dimension_numbers<[1], [1], [0], [0], [0, 0, 1, 0], [], []>} : vector<8x8xf32>, vector<8x8xf32>, vector<8x8xf32> -> vector<8x8xf32>
    %252 = arith.addf %251, %59 : vector<8x8xf32>
    %cst_88 = arith.constant dense<0xFF800000> : vector<8xf32>
    %253 = vector.multi_reduction <maximumf>, %252, %cst_88 [1] : vector<8x8xf32> to vector<8xf32>
    %254 = vector.shape_cast %253 : vector<8xf32> to vector<8x1xf32>
    %255 = vector.broadcast %254 : vector<8x1xf32> to vector<8x8xf32>
    %256 = arith.subf %252, %255 : vector<8x8xf32>
    %257 = math.exp %256 : vector<8x8xf32>
    %cst_89 = arith.constant dense<0.000000e+00> : vector<8xf32>
    %258 = vector.multi_reduction <add>, %257, %cst_89 [1] : vector<8x8xf32> to vector<8xf32>
    %259 = vector.shape_cast %258 : vector<8xf32> to vector<8x1xf32>
    %260 = tpu.reciprocal %259 : vector<8x1xf32> -> vector<8x1xf32>
    %261 = vector.broadcast %260 : vector<8x1xf32> to vector<8x8xf32>
    %262 = arith.mulf %257, %261 : vector<8x8xf32>
    %263 = vector.extract_strided_slice %232 {offsets = [0, 8], sizes = [8, 8], strides = [1, 1]} : vector<8x32xf32> to vector<8x8xf32>
    %cst_90 = arith.constant dense<0.000000e+00> : vector<8x8xf32>
    %264 = tpu.matmul %262, %263, %cst_90 {dimension_numbers = #tpu.dot_dimension_numbers<[1], [0], [0], [1], [0, 0, 1, 1], [], []>} : vector<8x8xf32>, vector<8x8xf32>, vector<8x8xf32> -> vector<8x8xf32>
    %265 = vector.extract_strided_slice %230 {offsets = [0, 16], sizes = [8, 8], strides = [1, 1]} : vector<8x32xf32> to vector<8x8xf32>
    %266 = vector.extract_strided_slice %231 {offsets = [0, 16], sizes = [8, 8], strides = [1, 1]} : vector<8x32xf32> to vector<8x8xf32>
    %cst_91 = arith.constant dense<0.000000e+00> : vector<8x8xf32>
    %267 = tpu.matmul %265, %266, %cst_91 {dimension_numbers = #tpu.dot_dimension_numbers<[1], [1], [0], [0], [0, 0, 1, 0], [], []>} : vector<8x8xf32>, vector<8x8xf32>, vector<8x8xf32> -> vector<8x8xf32>
    %268 = arith.addf %267, %59 : vector<8x8xf32>
    %cst_92 = arith.constant dense<0xFF800000> : vector<8xf32>
    %269 = vector.multi_reduction <maximumf>, %268, %cst_92 [1] : vector<8x8xf32> to vector<8xf32>
    %270 = vector.shape_cast %269 : vector<8xf32> to vector<8x1xf32>
    %271 = vector.broadcast %270 : vector<8x1xf32> to vector<8x8xf32>
    %272 = arith.subf %268, %271 : vector<8x8xf32>
    %273 = math.exp %272 : vector<8x8xf32>
    %cst_93 = arith.constant dense<0.000000e+00> : vector<8xf32>
    %274 = vector.multi_reduction <add>, %273, %cst_93 [1] : vector<8x8xf32> to vector<8xf32>
    %275 = vector.shape_cast %274 : vector<8xf32> to vector<8x1xf32>
    %276 = tpu.reciprocal %275 : vector<8x1xf32> -> vector<8x1xf32>
    %277 = vector.broadcast %276 : vector<8x1xf32> to vector<8x8xf32>
    %278 = arith.mulf %273, %277 : vector<8x8xf32>
    %279 = vector.extract_strided_slice %232 {offsets = [0, 16], sizes = [8, 8], strides = [1, 1]} : vector<8x32xf32> to vector<8x8xf32>
    %cst_94 = arith.constant dense<0.000000e+00> : vector<8x8xf32>
    %280 = tpu.matmul %278, %279, %cst_94 {dimension_numbers = #tpu.dot_dimension_numbers<[1], [0], [0], [1], [0, 0, 1, 1], [], []>} : vector<8x8xf32>, vector<8x8xf32>, vector<8x8xf32> -> vector<8x8xf32>
    %281 = vector.extract_strided_slice %230 {offsets = [0, 24], sizes = [8, 8], strides = [1, 1]} : vector<8x32xf32> to vector<8x8xf32>
    %282 = vector.extract_strided_slice %231 {offsets = [0, 24], sizes = [8, 8], strides = [1, 1]} : vector<8x32xf32> to vector<8x8xf32>
    %cst_95 = arith.constant dense<0.000000e+00> : vector<8x8xf32>
    %283 = tpu.matmul %281, %282, %cst_95 {dimension_numbers = #tpu.dot_dimension_numbers<[1], [1], [0], [0], [0, 0, 1, 0], [], []>} : vector<8x8xf32>, vector<8x8xf32>, vector<8x8xf32> -> vector<8x8xf32>
    %284 = arith.addf %283, %59 : vector<8x8xf32>
    %cst_96 = arith.constant dense<0xFF800000> : vector<8xf32>
    %285 = vector.multi_reduction <maximumf>, %284, %cst_96 [1] : vector<8x8xf32> to vector<8xf32>
    %286 = vector.shape_cast %285 : vector<8xf32> to vector<8x1xf32>
    %287 = vector.broadcast %286 : vector<8x1xf32> to vector<8x8xf32>
    %288 = arith.subf %284, %287 : vector<8x8xf32>
    %289 = math.exp %288 : vector<8x8xf32>
    %cst_97 = arith.constant dense<0.000000e+00> : vector<8xf32>
    %290 = vector.multi_reduction <add>, %289, %cst_97 [1] : vector<8x8xf32> to vector<8xf32>
    %291 = vector.shape_cast %290 : vector<8xf32> to vector<8x1xf32>
    %292 = tpu.reciprocal %291 : vector<8x1xf32> -> vector<8x1xf32>
    %293 = vector.broadcast %292 : vector<8x1xf32> to vector<8x8xf32>
    %294 = arith.mulf %289, %293 : vector<8x8xf32>
    %295 = vector.extract_strided_slice %232 {offsets = [0, 24], sizes = [8, 8], strides = [1, 1]} : vector<8x32xf32> to vector<8x8xf32>
    %cst_98 = arith.constant dense<0.000000e+00> : vector<8x8xf32>
    %296 = tpu.matmul %294, %295, %cst_98 {dimension_numbers = #tpu.dot_dimension_numbers<[1], [0], [0], [1], [0, 0, 1, 1], [], []>} : vector<8x8xf32>, vector<8x8xf32>, vector<8x8xf32> -> vector<8x8xf32>
    %297 = tpu.concatenate %248, %264, %280, %296 in 1 : vector<8x8xf32>, vector<8x8xf32>, vector<8x8xf32>, vector<8x8xf32> -> vector<8x32xf32>
    %c1_99 = arith.constant 1 : index
    %c32_100 = arith.constant 32 : index
    %c0_101 = arith.constant 0 : index
    %298 = vector.load %arg7[%c1_99, %c32_100, %c0_101] : memref<2x224x128xbf16, #tpu.memory_space<vmem>>, vector<1x32x32xbf16>
    %299 = vector.shape_cast %298 : vector<1x32x32xbf16> to vector<32x32xbf16>
    %300 = arith.truncf %297 : vector<8x32xf32> to vector<8x32xbf16>
    %cst_102 = arith.constant dense<0.000000e+00> : vector<8x32xf32>
    %301 = tpu.matmul %300, %299, %cst_102 {dimension_numbers = #tpu.dot_dimension_numbers<[1], [0], [0], [1], [0, 0, 1, 1], [], []>} : vector<8x32xbf16>, vector<32x32xbf16>, vector<8x32xf32> -> vector<8x32xf32>
    %c22 = arith.constant 22 : index
    %c0_103 = arith.constant 0 : index
    %302 = vector.load %arg5[%c22, %c0_103] : memref<32x128xf32, #tpu.memory_space<vmem>>, vector<1x32xf32>
    %303 = vector.broadcast %302 : vector<1x32xf32> to vector<8x32xf32>
    %304 = arith.addf %301, %303 : vector<8x32xf32>
    %305 = arith.addf %304, %220 : vector<8x32xf32>
    %c23 = arith.constant 23 : index
    %c0_104 = arith.constant 0 : index
    %306 = vector.load %arg5[%c23, %c0_104] : memref<32x128xf32, #tpu.memory_space<vmem>>, vector<1x32xf32>
    %c24 = arith.constant 24 : index
    %c0_105 = arith.constant 0 : index
    %307 = vector.load %arg5[%c24, %c0_105] : memref<32x128xf32, #tpu.memory_space<vmem>>, vector<1x32xf32>
    %cst_106 = arith.constant dense<0.000000e+00> : vector<8xf32>
    %308 = vector.multi_reduction <add>, %305, %cst_106 [1] : vector<8x32xf32> to vector<8xf32>
    %309 = vector.shape_cast %308 : vector<8xf32> to vector<8x1xf32>
    %cst_107 = arith.constant 3.200000e+01 : f32
    %310 = vector.broadcast %cst_107 : f32 to vector<8x1xf32>
    %311 = arith.divf %309, %310 : vector<8x1xf32>
    %312 = vector.broadcast %311 : vector<8x1xf32> to vector<8x32xf32>
    %313 = arith.subf %305, %312 : vector<8x32xf32>
    %314 = arith.mulf %313, %313 : vector<8x32xf32>
    %cst_108 = arith.constant dense<0.000000e+00> : vector<8xf32>
    %315 = vector.multi_reduction <add>, %314, %cst_108 [1] : vector<8x32xf32> to vector<8xf32>
    %316 = vector.shape_cast %315 : vector<8xf32> to vector<8x1xf32>
    %cst_109 = arith.constant 3.200000e+01 : f32
    %317 = vector.broadcast %cst_109 : f32 to vector<8x1xf32>
    %318 = arith.divf %316, %317 : vector<8x1xf32>
    %319 = vector.broadcast %311 : vector<8x1xf32> to vector<8x32xf32>
    %320 = arith.subf %305, %319 : vector<8x32xf32>
    %cst_110 = arith.constant 9.99999996E-13 : f32
    %321 = vector.broadcast %cst_110 : f32 to vector<8x1xf32>
    %322 = arith.addf %318, %321 : vector<8x1xf32>
    %323 = math.rsqrt %322 : vector<8x1xf32>
    %324 = vector.broadcast %323 : vector<8x1xf32> to vector<8x32xf32>
    %325 = arith.mulf %320, %324 : vector<8x32xf32>
    %326 = vector.broadcast %306 : vector<1x32xf32> to vector<8x32xf32>
    %327 = arith.mulf %325, %326 : vector<8x32xf32>
    %328 = vector.broadcast %307 : vector<1x32xf32> to vector<8x32xf32>
    %329 = arith.addf %327, %328 : vector<8x32xf32>
    %c1_111 = arith.constant 1 : index
    %c64_112 = arith.constant 64 : index
    %c0_113 = arith.constant 0 : index
    %330 = vector.load %arg7[%c1_111, %c64_112, %c0_113] : memref<2x224x128xbf16, #tpu.memory_space<vmem>>, vector<1x32x128xbf16>
    %331 = vector.shape_cast %330 : vector<1x32x128xbf16> to vector<32x128xbf16>
    %332 = arith.truncf %329 : vector<8x32xf32> to vector<8x32xbf16>
    %cst_114 = arith.constant dense<0.000000e+00> : vector<8x128xf32>
    %333 = tpu.matmul %332, %331, %cst_114 {dimension_numbers = #tpu.dot_dimension_numbers<[1], [0], [0], [1], [0, 0, 1, 1], [], []>} : vector<8x32xbf16>, vector<32x128xbf16>, vector<8x128xf32> -> vector<8x128xf32>
    %c25 = arith.constant 25 : index
    %c0_115 = arith.constant 0 : index
    %334 = vector.load %arg5[%c25, %c0_115] : memref<32x128xf32, #tpu.memory_space<vmem>>, vector<1x128xf32>
    %335 = vector.broadcast %334 : vector<1x128xf32> to vector<8x128xf32>
    %336 = arith.addf %333, %335 : vector<8x128xf32>
    %337 = arith.mulf %336, %336 : vector<8x128xf32>
    %338 = arith.mulf %336, %337 : vector<8x128xf32>
    %cst_116 = arith.constant 4.471500e-02 : f32
    %339 = vector.broadcast %cst_116 : f32 to vector<8x128xf32>
    %340 = arith.mulf %339, %338 : vector<8x128xf32>
    %341 = arith.addf %336, %340 : vector<8x128xf32>
    %cst_117 = arith.constant 0.797884583 : f32
    %342 = vector.broadcast %cst_117 : f32 to vector<8x128xf32>
    %343 = arith.mulf %342, %341 : vector<8x128xf32>
    %344 = math.tanh %343 : vector<8x128xf32>
    %cst_118 = arith.constant 1.000000e+00 : f32
    %345 = vector.broadcast %cst_118 : f32 to vector<8x128xf32>
    %346 = arith.addf %345, %344 : vector<8x128xf32>
    %cst_119 = arith.constant 5.000000e-01 : f32
    %347 = vector.broadcast %cst_119 : f32 to vector<8x128xf32>
    %348 = arith.mulf %347, %346 : vector<8x128xf32>
    %349 = arith.mulf %336, %348 : vector<8x128xf32>
    %c1_120 = arith.constant 1 : index
    %c96_121 = arith.constant 96 : index
    %c0_122 = arith.constant 0 : index
    %350 = vector.load %arg7[%c1_120, %c96_121, %c0_122] : memref<2x224x128xbf16, #tpu.memory_space<vmem>>, vector<1x128x32xbf16>
    %351 = vector.shape_cast %350 : vector<1x128x32xbf16> to vector<128x32xbf16>
    %352 = arith.truncf %349 : vector<8x128xf32> to vector<8x128xbf16>
    %cst_123 = arith.constant dense<0.000000e+00> : vector<8x32xf32>
    %353 = tpu.matmul %352, %351, %cst_123 {dimension_numbers = #tpu.dot_dimension_numbers<[1], [0], [0], [1], [0, 0, 1, 1], [], []>} : vector<8x128xbf16>, vector<128x32xbf16>, vector<8x32xf32> -> vector<8x32xf32>
    %c26 = arith.constant 26 : index
    %c0_124 = arith.constant 0 : index
    %354 = vector.load %arg5[%c26, %c0_124] : memref<32x128xf32, #tpu.memory_space<vmem>>, vector<1x32xf32>
    %355 = vector.broadcast %354 : vector<1x32xf32> to vector<8x32xf32>
    %356 = arith.addf %353, %355 : vector<8x32xf32>
    %357 = arith.addf %356, %329 : vector<8x32xf32>
    %c27 = arith.constant 27 : index
    %c0_125 = arith.constant 0 : index
    %358 = vector.load %arg5[%c27, %c0_125] : memref<32x128xf32, #tpu.memory_space<vmem>>, vector<1x32xf32>
    %c28 = arith.constant 28 : index
    %c0_126 = arith.constant 0 : index
    %359 = vector.load %arg5[%c28, %c0_126] : memref<32x128xf32, #tpu.memory_space<vmem>>, vector<1x32xf32>
    %cst_127 = arith.constant dense<0.000000e+00> : vector<8xf32>
    %360 = vector.multi_reduction <add>, %357, %cst_127 [1] : vector<8x32xf32> to vector<8xf32>
    %361 = vector.shape_cast %360 : vector<8xf32> to vector<8x1xf32>
    %cst_128 = arith.constant 3.200000e+01 : f32
    %362 = vector.broadcast %cst_128 : f32 to vector<8x1xf32>
    %363 = arith.divf %361, %362 : vector<8x1xf32>
    %364 = vector.broadcast %363 : vector<8x1xf32> to vector<8x32xf32>
    %365 = arith.subf %357, %364 : vector<8x32xf32>
    %366 = arith.mulf %365, %365 : vector<8x32xf32>
    %cst_129 = arith.constant dense<0.000000e+00> : vector<8xf32>
    %367 = vector.multi_reduction <add>, %366, %cst_129 [1] : vector<8x32xf32> to vector<8xf32>
    %368 = vector.shape_cast %367 : vector<8xf32> to vector<8x1xf32>
    %cst_130 = arith.constant 3.200000e+01 : f32
    %369 = vector.broadcast %cst_130 : f32 to vector<8x1xf32>
    %370 = arith.divf %368, %369 : vector<8x1xf32>
    %371 = vector.broadcast %363 : vector<8x1xf32> to vector<8x32xf32>
    %372 = arith.subf %357, %371 : vector<8x32xf32>
    %cst_131 = arith.constant 9.99999996E-13 : f32
    %373 = vector.broadcast %cst_131 : f32 to vector<8x1xf32>
    %374 = arith.addf %370, %373 : vector<8x1xf32>
    %375 = math.rsqrt %374 : vector<8x1xf32>
    %376 = vector.broadcast %375 : vector<8x1xf32> to vector<8x32xf32>
    %377 = arith.mulf %372, %376 : vector<8x32xf32>
    %378 = vector.broadcast %358 : vector<1x32xf32> to vector<8x32xf32>
    %379 = arith.mulf %377, %378 : vector<8x32xf32>
    %380 = vector.broadcast %359 : vector<1x32xf32> to vector<8x32xf32>
    %381 = arith.addf %379, %380 : vector<8x32xf32>
    %c64_132 = arith.constant 64 : index
    %c0_133 = arith.constant 0 : index
    %382 = vector.load %arg6[%c64_132, %c0_133] : memref<176x128xbf16, #tpu.memory_space<vmem>>, vector<32x32xbf16>
    %383 = arith.truncf %381 : vector<8x32xf32> to vector<8x32xbf16>
    %cst_134 = arith.constant dense<0.000000e+00> : vector<8x32xf32>
    %384 = tpu.matmul %383, %382, %cst_134 {dimension_numbers = #tpu.dot_dimension_numbers<[1], [0], [0], [1], [0, 0, 1, 1], [], []>} : vector<8x32xbf16>, vector<32x32xbf16>, vector<8x32xf32> -> vector<8x32xf32>
    %c5 = arith.constant 5 : index
    %c0_135 = arith.constant 0 : index
    %385 = vector.load %arg5[%c5, %c0_135] : memref<32x128xf32, #tpu.memory_space<vmem>>, vector<1x32xf32>
    %386 = vector.broadcast %385 : vector<1x32xf32> to vector<8x32xf32>
    %387 = arith.addf %384, %386 : vector<8x32xf32>
    %c6 = arith.constant 6 : index
    %c0_136 = arith.constant 0 : index
    %388 = vector.load %arg5[%c6, %c0_136] : memref<32x128xf32, #tpu.memory_space<vmem>>, vector<1x32xf32>
    %c7 = arith.constant 7 : index
    %c0_137 = arith.constant 0 : index
    %389 = vector.load %arg5[%c7, %c0_137] : memref<32x128xf32, #tpu.memory_space<vmem>>, vector<1x32xf32>
    %cst_138 = arith.constant dense<0.000000e+00> : vector<8xf32>
    %390 = vector.multi_reduction <add>, %387, %cst_138 [1] : vector<8x32xf32> to vector<8xf32>
    %391 = vector.shape_cast %390 : vector<8xf32> to vector<8x1xf32>
    %cst_139 = arith.constant 3.200000e+01 : f32
    %392 = vector.broadcast %cst_139 : f32 to vector<8x1xf32>
    %393 = arith.divf %391, %392 : vector<8x1xf32>
    %394 = vector.broadcast %393 : vector<8x1xf32> to vector<8x32xf32>
    %395 = arith.subf %387, %394 : vector<8x32xf32>
    %396 = arith.mulf %395, %395 : vector<8x32xf32>
    %cst_140 = arith.constant dense<0.000000e+00> : vector<8xf32>
    %397 = vector.multi_reduction <add>, %396, %cst_140 [1] : vector<8x32xf32> to vector<8xf32>
    %398 = vector.shape_cast %397 : vector<8xf32> to vector<8x1xf32>
    %cst_141 = arith.constant 3.200000e+01 : f32
    %399 = vector.broadcast %cst_141 : f32 to vector<8x1xf32>
    %400 = arith.divf %398, %399 : vector<8x1xf32>
    %401 = vector.broadcast %393 : vector<8x1xf32> to vector<8x32xf32>
    %402 = arith.subf %387, %401 : vector<8x32xf32>
    %cst_142 = arith.constant 9.99999974E-6 : f32
    %403 = vector.broadcast %cst_142 : f32 to vector<8x1xf32>
    %404 = arith.addf %400, %403 : vector<8x1xf32>
    %405 = math.rsqrt %404 : vector<8x1xf32>
    %406 = vector.broadcast %405 : vector<8x1xf32> to vector<8x32xf32>
    %407 = arith.mulf %402, %406 : vector<8x32xf32>
    %408 = vector.broadcast %388 : vector<1x32xf32> to vector<8x32xf32>
    %409 = arith.mulf %407, %408 : vector<8x32xf32>
    %410 = vector.broadcast %389 : vector<1x32xf32> to vector<8x32xf32>
    %411 = arith.addf %409, %410 : vector<8x32xf32>
    %cst_143 = arith.constant 0.000000e+00 : f32
    %412 = vector.broadcast %cst_143 : f32 to vector<8x32xf32>
    %413 = arith.maximumf %411, %412 : vector<8x32xf32>
    %c96_144 = arith.constant 96 : index
    %c0_145 = arith.constant 0 : index
    %414 = vector.load %arg6[%c96_144, %c0_145] : memref<176x128xbf16, #tpu.memory_space<vmem>>, vector<32x128xbf16>
    %415 = arith.truncf %413 : vector<8x32xf32> to vector<8x32xbf16>
    %cst_146 = arith.constant dense<0.000000e+00> : vector<8x128xf32>
    %416 = tpu.matmul %415, %414, %cst_146 {dimension_numbers = #tpu.dot_dimension_numbers<[1], [0], [0], [1], [0, 0, 1, 1], [], []>} : vector<8x32xbf16>, vector<32x128xbf16>, vector<8x128xf32> -> vector<8x128xf32>
    %c8 = arith.constant 8 : index
    %c0_147 = arith.constant 0 : index
    %417 = vector.load %arg5[%c8, %c0_147] : memref<32x128xf32, #tpu.memory_space<vmem>>, vector<1x128xf32>
    %418 = vector.broadcast %417 : vector<1x128xf32> to vector<8x128xf32>
    %419 = arith.addf %416, %418 : vector<8x128xf32>
    %c0_148 = arith.constant 0 : index
    %c0_149 = arith.constant 0 : index
    %420 = vector.load %arg8[%c0_148, %c0_149] : memref<8x128xf32, #tpu.memory_space<vmem>>, vector<8x128xf32>
    tpu.vector_store %arg8[%c0_148, %c0_149], %419 {strides = array<i32>} : memref<8x128xf32, #tpu.memory_space<vmem>>, vector<8x128xf32>,
    %c128 = arith.constant 128 : index
    %c0_150 = arith.constant 0 : index
    %421 = vector.load %arg6[%c128, %c0_150] : memref<176x128xbf16, #tpu.memory_space<vmem>>, vector<32x16xbf16>
    %422 = arith.truncf %381 : vector<8x32xf32> to vector<8x32xbf16>
    %cst_151 = arith.constant dense<0.000000e+00> : vector<8x16xf32>
    %423 = tpu.matmul %422, %421, %cst_151 {dimension_numbers = #tpu.dot_dimension_numbers<[1], [0], [0], [1], [0, 0, 1, 1], [], []>} : vector<8x32xbf16>, vector<32x16xbf16>, vector<8x16xf32> -> vector<8x16xf32>
    %c9 = arith.constant 9 : index
    %c0_152 = arith.constant 0 : index
    %424 = vector.load %arg5[%c9, %c0_152] : memref<32x128xf32, #tpu.memory_space<vmem>>, vector<1x16xf32>
    %425 = vector.broadcast %424 : vector<1x16xf32> to vector<8x16xf32>
    %426 = arith.addf %423, %425 : vector<8x16xf32>
    %c10 = arith.constant 10 : index
    %c0_153 = arith.constant 0 : index
    %427 = vector.load %arg5[%c10, %c0_153] : memref<32x128xf32, #tpu.memory_space<vmem>>, vector<1x16xf32>
    %c11 = arith.constant 11 : index
    %c0_154 = arith.constant 0 : index
    %428 = vector.load %arg5[%c11, %c0_154] : memref<32x128xf32, #tpu.memory_space<vmem>>, vector<1x16xf32>
    %cst_155 = arith.constant dense<0.000000e+00> : vector<8xf32>
    %429 = vector.multi_reduction <add>, %426, %cst_155 [1] : vector<8x16xf32> to vector<8xf32>
    %430 = vector.shape_cast %429 : vector<8xf32> to vector<8x1xf32>
    %cst_156 = arith.constant 1.600000e+01 : f32
    %431 = vector.broadcast %cst_156 : f32 to vector<8x1xf32>
    %432 = arith.divf %430, %431 : vector<8x1xf32>
    %433 = vector.broadcast %432 : vector<8x1xf32> to vector<8x16xf32>
    %434 = arith.subf %426, %433 : vector<8x16xf32>
    %435 = arith.mulf %434, %434 : vector<8x16xf32>
    %cst_157 = arith.constant dense<0.000000e+00> : vector<8xf32>
    %436 = vector.multi_reduction <add>, %435, %cst_157 [1] : vector<8x16xf32> to vector<8xf32>
    %437 = vector.shape_cast %436 : vector<8xf32> to vector<8x1xf32>
    %cst_158 = arith.constant 1.600000e+01 : f32
    %438 = vector.broadcast %cst_158 : f32 to vector<8x1xf32>
    %439 = arith.divf %437, %438 : vector<8x1xf32>
    %440 = vector.broadcast %432 : vector<8x1xf32> to vector<8x16xf32>
    %441 = arith.subf %426, %440 : vector<8x16xf32>
    %cst_159 = arith.constant 9.99999974E-6 : f32
    %442 = vector.broadcast %cst_159 : f32 to vector<8x1xf32>
    %443 = arith.addf %439, %442 : vector<8x1xf32>
    %444 = math.rsqrt %443 : vector<8x1xf32>
    %445 = vector.broadcast %444 : vector<8x1xf32> to vector<8x16xf32>
    %446 = arith.mulf %441, %445 : vector<8x16xf32>
    %447 = vector.broadcast %427 : vector<1x16xf32> to vector<8x16xf32>
    %448 = arith.mulf %446, %447 : vector<8x16xf32>
    %449 = vector.broadcast %428 : vector<1x16xf32> to vector<8x16xf32>
    %450 = arith.addf %448, %449 : vector<8x16xf32>
    %cst_160 = arith.constant 0.000000e+00 : f32
    %451 = vector.broadcast %cst_160 : f32 to vector<8x16xf32>
    %452 = arith.maximumf %450, %451 : vector<8x16xf32>
    %c160 = arith.constant 160 : index
    %c0_161 = arith.constant 0 : index
    %453 = vector.load %arg6[%c160, %c0_161] : memref<176x128xbf16, #tpu.memory_space<vmem>>, vector<16x128xbf16>
    %454 = arith.truncf %452 : vector<8x16xf32> to vector<8x16xbf16>
    %cst_162 = arith.constant dense<0.000000e+00> : vector<8x128xf32>
    %455 = tpu.matmul %454, %453, %cst_162 {dimension_numbers = #tpu.dot_dimension_numbers<[1], [0], [0], [1], [0, 0, 1, 1], [], []>} : vector<8x16xbf16>, vector<16x128xbf16>, vector<8x128xf32> -> vector<8x128xf32>
    %c12 = arith.constant 12 : index
    %c0_163 = arith.constant 0 : index
    %456 = vector.load %arg5[%c12, %c0_163] : memref<32x128xf32, #tpu.memory_space<vmem>>, vector<1x128xf32>
    %457 = vector.broadcast %456 : vector<1x128xf32> to vector<8x128xf32>
    %458 = arith.addf %455, %457 : vector<8x128xf32>
    %459 = math.tanh %458 : vector<8x128xf32>
    %c0_164 = arith.constant 0 : index
    %c0_165 = arith.constant 0 : index
    %460 = vector.load %arg9[%c0_164, %c0_165] : memref<8x128xf32, #tpu.memory_space<vmem>>, vector<8x128xf32>
    tpu.vector_store %arg9[%c0_164, %c0_165], %459 {strides = array<i32>} : memref<8x128xf32, #tpu.memory_space<vmem>>, vector<8x128xf32>,
    return
  }
  func.func @transform_0(%arg0: i32) -> (i32, i32) {
    %c0_i32 = arith.constant 0 : i32
    %c0_i32_0 = arith.constant 0 : i32
    return %arg0, %c0_i32 : i32, i32
  }
  func.func @transform_1(%arg0: i32) -> (i32, i32) {
    %c0_i32 = arith.constant 0 : i32
    %c0_i32_0 = arith.constant 0 : i32
    return %arg0, %c0_i32 : i32, i32
  }
  func.func @transform_2(%arg0: i32) -> (i32, i32) {
    %c0_i32 = arith.constant 0 : i32
    %c0_i32_0 = arith.constant 0 : i32
    return %arg0, %c0_i32 : i32, i32
  }
  func.func @transform_3(%arg0: i32) -> (i32, i32) {
    %c0_i32 = arith.constant 0 : i32
    %c0_i32_0 = arith.constant 0 : i32
    return %arg0, %c0_i32 : i32, i32
  }
  func.func @transform_4(%arg0: i32) -> (i32, i32) {
    %c0_i32 = arith.constant 0 : i32
    %c0_i32_0 = arith.constant 0 : i32
    %c0_i32_1 = arith.constant 0 : i32
    return %c0_i32, %c0_i32_0 : i32, i32
  }
  func.func @transform_5(%arg0: i32) -> (i32, i32) {
    %c0_i32 = arith.constant 0 : i32
    %c0_i32_0 = arith.constant 0 : i32
    %c0_i32_1 = arith.constant 0 : i32
    return %c0_i32, %c0_i32_0 : i32, i32
  }
  func.func @transform_6(%arg0: i32) -> (i32, i32, i32) {
    %c0_i32 = arith.constant 0 : i32
    %c0_i32_0 = arith.constant 0 : i32
    %c0_i32_1 = arith.constant 0 : i32
    %c0_i32_2 = arith.constant 0 : i32
    return %c0_i32, %c0_i32_0, %c0_i32_1 : i32, i32, i32
  }
  func.func @transform_7(%arg0: i32) -> (i32, i32) {
    %c0_i32 = arith.constant 0 : i32
    %c0_i32_0 = arith.constant 0 : i32
    return %arg0, %c0_i32 : i32, i32
  }
  func.func @transform_8(%arg0: i32) -> (i32, i32) {
    %c0_i32 = arith.constant 0 : i32
    %c0_i32_0 = arith.constant 0 : i32
    return %arg0, %c0_i32 : i32, i32
  }
}

</mosaic_0001>

<llo_original>
// kernel: forward.1
$region0: #{forward.1}
  #allocation0 [shape = 'u32[]', space=smem, size = 0x4, offset = 0x4, fixed_abs, tag = 'smem constant byte address 0x4 - core index']
  #allocation1 [shape = 'u32[72,128]{1,0:T(1,128)}', space=vmem, size = 0x9000, scoped, tag = 'internal scratch']
  %s0 = inlined_call_operand.vmem [shape: f32[16,52], index: 0, kind: input, shape index: {}]
  %s1 = inlined_call_operand.vmem [shape: f32[16,32], index: 1, kind: input, shape index: {}]
  %s2 = inlined_call_operand.vmem [shape: f32[16,32], index: 2, kind: input, shape index: {}]
  %s3 = inlined_call_operand.vmem [shape: f32[16,8], index: 3, kind: input, shape index: {}]
  %s4 = inlined_call_operand.vmem [shape: f32[32,128], index: 4, kind: input, shape index: {}]
  %s5 = inlined_call_operand.vmem [shape: bf16[176,128], index: 5, kind: input, shape index: {}]
  %s6 = inlined_call_operand.vmem [shape: bf16[2,224,128], index: 6, kind: input, shape index: {}]
  %s7 = inlined_call_operand.vmem [shape: f32[16,128], index: 7, kind: output, shape index: {0}]
  %s8 = inlined_call_operand.vmem [shape: f32[16,128], index: 8, kind: output, shape index: {1}]
  %9 = xla_tuple %s7, %s8
  %s10 = sld [smem:[#allocation0]]
  $region69: #{forward.1} parent=0
    _
  %s12 = ssub.s32 1, %s10
  %s13 = scalar_select 0, %s12, %s10
  loop: start=0, step=1, limit=4
  $region2: #{forward.1} parent=0 // loop_pre_header
    _
  $region3: #{forward.1} parent=0 // loop_header
    %s15 = sphi 0, %s19
    %p16 = scmp.ge.s32.totalorder %s15, 4
    %s25 = sphi 0, %s27
    %s28 = sphi 0, %s25
    %s29 = sphi 0, %s28
    %s45 = sphi 0, %s29
    %s51 = sphi 0, %s53
    %s54 = sphi 0, %s51
    %s55 = sphi 0, %s54
    %s71 = sphi 0, %s55
    %s77 = sphi 0, %s79
    %s80 = sphi 0, %s77
    %s81 = sphi 0, %s80
    %s97 = sphi 0, %s81
    %s103 = sphi 0, %s105
    %s106 = sphi 0, %s103
    %s107 = sphi 0, %s106
    %s123 = sphi 0, %s107
    %s127 = sphi 0, %s127
    %s129 = sphi 0, %s127
    %s130 = sphi 0, %s129
    %s144 = sphi 0, %s130
    %s148 = sphi 0, %s148
    %s150 = sphi 0, %s148
    %s151 = sphi 0, %s150
    %s165 = sphi 0, %s151
    %s169 = sphi 0, %s169
    %s171 = sphi 0, %s169
    %s172 = sphi 0, %s171
    %s186 = sphi 0, %s172
    %s192 = sphi 0, %s194
    %s195 = sphi 0, %s192
    %s196 = sphi 0, %s195
    %s212 = sphi 0, %s196
    %s218 = sphi 0, %s220
    %s221 = sphi 0, %s218
    %s222 = sphi 0, %s221
    %s238 = sphi 0, %s222
  $region4: #{forward.1} parent=0 // loop_header_branch
    %18 = sbr.rel (%p16) target = $region8
  $region5: #{forward.1} parent=0 // loop_body
    %s20 = ssub.s32 %s15, 1
    %s21 = ssub.s32 %s15, 2
    %s22 = sadd.s32 %s15, 1
    %s23 = ssub.s32 %s15, %s22
    %p24 = scmp.eq.s32.totalorder %s23, 0
    %s26 = sadd.s32 %s25, 1
    %s27 = scalar_select %p24, %s25, %s26
    %p30 = pneg %p24
    %p31 = scmp.eq.s32.totalorder %s15, 1
    %p32 = por %p30, %p31
    %p33 = scmp.ne.s32.totalorder %s25, %s28
    %p34 = scmp.eq.s32.totalorder %s15, 0
    %p35 = por %p33, %p34
    %p36 = scmp.ne.s32.totalorder %s25, %s28
    %p37 = scmp.eq.s32.totalorder %s20, 1
    %p38 = por %p36, %p37
    %p39 = scmp.ne.s32.totalorder %s28, %s29
    %p40 = scmp.eq.s32.totalorder %s20, 0
    %p41 = por %p39, %p40
    %p42 = scmp.ne.s32.totalorder %s28, %s29
    %p43 = scmp.eq.s32.totalorder %s21, 1
    %p44 = por %p42, %p43
    %p46 = scmp.ne.s32.totalorder %s29, %s45
    %p47 = scmp.eq.s32.totalorder %s21, 0
    %p48 = por %p46, %p47
    %s49 = ssub.s32 %s15, %s22
    %p50 = scmp.eq.s32.totalorder %s49, 0
    %s52 = sadd.s32 %s51, 1
    %s53 = scalar_select %p50, %s51, %s52
    %p56 = pneg %p50
    %p57 = scmp.eq.s32.totalorder %s15, 1
    %p58 = por %p56, %p57
    %p59 = scmp.ne.s32.totalorder %s51, %s54
    %p60 = scmp.eq.s32.totalorder %s15, 0
    %p61 = por %p59, %p60
    %p62 = scmp.ne.s32.totalorder %s51, %s54
    %p63 = scmp.eq.s32.totalorder %s20, 1
    %p64 = por %p62, %p63
    %p65 = scmp.ne.s32.totalorder %s54, %s55
    %p66 = scmp.eq.s32.totalorder %s20, 0
    %p67 = por %p65, %p66
    %p68 = scmp.ne.s32.totalorder %s54, %s55
    %p69 = scmp.eq.s32.totalorder %s21, 1
    %p70 = por %p68, %p69
    %p72 = scmp.ne.s32.totalorder %s55, %s71
    %p73 = scmp.eq.s32.totalorder %s21, 0
    %p74 = por %p72, %p73
    %s75 = ssub.s32 %s15, %s22
    %p76 = scmp.eq.s32.totalorder %s75, 0
    %s78 = sadd.s32 %s77, 1
    %s79 = scalar_select %p76, %s77, %s78
    %p82 = pneg %p76
    %p83 = scmp.eq.s32.totalorder %s15, 1
    %p84 = por %p82, %p83
    %p85 = scmp.ne.s32.totalorder %s77, %s80
    %p86 = scmp.eq.s32.totalorder %s15, 0
    %p87 = por %p85, %p86
    %p88 = scmp.ne.s32.totalorder %s77, %s80
    %p89 = scmp.eq.s32.totalorder %s20, 1
    %p90 = por %p88, %p89
    %p91 = scmp.ne.s32.totalorder %s80, %s81
    %p92 = scmp.eq.s32.totalorder %s20, 0
    %p93 = por %p91, %p92
    %p94 = scmp.ne.s32.totalorder %s80, %s81
    %p95 = scmp.eq.s32.totalorder %s21, 1
    %p96 = por %p94, %p95
    %p98 = scmp.ne.s32.totalorder %s81, %s97
    %p99 = scmp.eq.s32.totalorder %s21, 0
    %p100 = por %p98, %p99
    %s101 = ssub.s32 %s15, %s22
    %p102 = scmp.eq.s32.totalorder %s101, 0
    %s104 = sadd.s32 %s103, 1
    %s105 = scalar_select %p102, %s103, %s104
    %p108 = pneg %p102
    %p109 = scmp.eq.s32.totalorder %s15, 1
    %p110 = por %p108, %p109
    %p111 = scmp.ne.s32.totalorder %s103, %s106
    %p112 = scmp.eq.s32.totalorder %s15, 0
    %p113 = por %p111, %p112
    %p114 = scmp.ne.s32.totalorder %s103, %s106
    %p115 = scmp.eq.s32.totalorder %s20, 1
    %p116 = por %p114, %p115
    %p117 = scmp.ne.s32.totalorder %s106, %s107
    %p118 = scmp.eq.s32.totalorder %s20, 0
    %p119 = por %p117, %p118
    %p120 = scmp.ne.s32.totalorder %s106, %s107
    %p121 = scmp.eq.s32.totalorder %s21, 1
    %p122 = por %p120, %p121
    %p124 = scmp.ne.s32.totalorder %s107, %s123
    %p125 = scmp.eq.s32.totalorder %s21, 0
    %p126 = por %p124, %p125
    %s128 = sadd.s32 %s127, 1
    %p131 = scmp.eq.s32.totalorder %s15, 1
    %p132 = scmp.ne.s32.totalorder %s127, %s129
    %p133 = scmp.eq.s32.totalorder %s15, 0
    %p134 = por %p132, %p133
    %p135 = scmp.ne.s32.totalorder %s127, %s129
    %p136 = scmp.eq.s32.totalorder %s20, 1
    %p137 = por %p135, %p136
    %p138 = scmp.ne.s32.totalorder %s129, %s130
    %p139 = scmp.eq.s32.totalorder %s20, 0
    %p140 = por %p138, %p139
    %p141 = scmp.ne.s32.totalorder %s129, %s130
    %p142 = scmp.eq.s32.totalorder %s21, 1
    %p143 = por %p141, %p142
    %p145 = scmp.ne.s32.totalorder %s130, %s144
    %p146 = scmp.eq.s32.totalorder %s21, 0
    %p147 = por %p145, %p146
    %s149 = sadd.s32 %s148, 1
    %p152 = scmp.eq.s32.totalorder %s15, 1
    %p153 = scmp.ne.s32.totalorder %s148, %s150
    %p154 = scmp.eq.s32.totalorder %s15, 0
    %p155 = por %p153, %p154
    %p156 = scmp.ne.s32.totalorder %s148, %s150
    %p157 = scmp.eq.s32.totalorder %s20, 1
    %p158 = por %p156, %p157
    %p159 = scmp.ne.s32.totalorder %s150, %s151
    %p160 = scmp.eq.s32.totalorder %s20, 0
    %p161 = por %p159, %p160
    %p162 = scmp.ne.s32.totalorder %s150, %s151
    %p163 = scmp.eq.s32.totalorder %s21, 1
    %p164 = por %p162, %p163
    %p166 = scmp.ne.s32.totalorder %s151, %s165
    %p167 = scmp.eq.s32.totalorder %s21, 0
    %p168 = por %p166, %p167
    %s170 = sadd.s32 %s169, 1
    %p173 = scmp.eq.s32.totalorder %s15, 1
    %p174 = scmp.ne.s32.totalorder %s169, %s171
    %p175 = scmp.eq.s32.totalorder %s15, 0
    %p176 = por %p174, %p175
    %p177 = scmp.ne.s32.totalorder %s169, %s171
    %p178 = scmp.eq.s32.totalorder %s20, 1
    %p179 = por %p177, %p178
    %p180 = scmp.ne.s32.totalorder %s171, %s172
    %p181 = scmp.eq.s32.totalorder %s20, 0
    %p182 = por %p180, %p181
    %p183 = scmp.ne.s32.totalorder %s171, %s172
    %p184 = scmp.eq.s32.totalorder %s21, 1
    %p185 = por %p183, %p184
    %p187 = scmp.ne.s32.totalorder %s172, %s186
    %p188 = scmp.eq.s32.totalorder %s21, 0
    %p189 = por %p187, %p188
    %s190 = ssub.s32 %s15, %s22
    %p191 = scmp.eq.s32.totalorder %s190, 0
    %s193 = sadd.s32 %s192, 1
    %s194 = scalar_select %p191, %s192, %s193
    %p197 = pneg %p191
    %p198 = scmp.eq.s32.totalorder %s15, 1
    %p199 = por %p197, %p198
    %p200 = scmp.ne.s32.totalorder %s192, %s195
    %p201 = scmp.eq.s32.totalorder %s15, 0
    %p202 = por %p200, %p201
    %p203 = scmp.ne.s32.totalorder %s192, %s195
    %p204 = scmp.eq.s32.totalorder %s20, 1
    %p205 = por %p203, %p204
    %p206 = scmp.ne.s32.totalorder %s195, %s196
    %p207 = scmp.eq.s32.totalorder %s20, 0
    %p208 = por %p206, %p207
    %p209 = scmp.ne.s32.totalorder %s195, %s196
    %p210 = scmp.eq.s32.totalorder %s21, 1
    %p211 = por %p209, %p210
    %p213 = scmp.ne.s32.totalorder %s196, %s212
    %p214 = scmp.eq.s32.totalorder %s21, 0
    %p215 = por %p213, %p214
    %s216 = ssub.s32 %s15, %s22
    %p217 = scmp.eq.s32.totalorder %s216, 0
    %s219 = sadd.s32 %s218, 1
    %s220 = scalar_select %p217, %s218, %s219
    %p223 = pneg %p217
    %p224 = scmp.eq.s32.totalorder %s15, 1
    %p225 = por %p223, %p224
    %p226 = scmp.ne.s32.totalorder %s218, %s221
    %p227 = scmp.eq.s32.totalorder %s15, 0
    %p228 = por %p226, %p227
    %p229 = scmp.ne.s32.totalorder %s218, %s221
    %p230 = scmp.eq.s32.totalorder %s20, 1
    %p231 = por %p229, %p230
    %p232 = scmp.ne.s32.totalorder %s221, %s222
    %p233 = scmp.eq.s32.totalorder %s20, 0
    %p234 = por %p232, %p233
    %p235 = scmp.ne.s32.totalorder %s221, %s222
    %p236 = scmp.eq.s32.totalorder %s21, 1
    %p237 = por %p235, %p236
    %p239 = scmp.ne.s32.totalorder %s222, %s238
    %p240 = scmp.eq.s32.totalorder %s21, 0
    %p241 = por %p239, %p240
    %p242 = scmp.le.s32.totalorder 1, %s15
    %p243 = scmp.lt.s32.totalorder %s15, 3
    %p244 = pnand %p242, %p243
    %p245 = pneg %p244
    // Predicated region
    $region9: #{forward.1} parent=5 // pred_check
      _
    $region10: #{forward.1} parent=5 // pred_check_branch
      %247 = sbr.rel (%p244) target = $region12
    $region11: #{forward.1} parent=5 // pred_region
      %s248 = ssub.s32 %s15, 1
      // Predicated region
      $region13: #{forward.1} parent=11 // pred_check
        %p249 = pneg %p140
      $region14: #{forward.1} parent=11 // pred_check_branch
        %251 = sbr.rel (%p249) target = $region16
      $region15: #{forward.1} parent=11 // pred_region
        _
      $region16: #{forward.1} parent=11 // pred_fallthru
        _
      // Predicated region
      $region17: #{forward.1} parent=11 // pred_check
        %p252 = pneg %p161
      $region18: #{forward.1} parent=11 // pred_check_branch
        %254 = sbr.rel (%p252) target = $region20
      $region19: #{forward.1} parent=11 // pred_region
        _
      $region20: #{forward.1} parent=11 // pred_fallthru
        _
      // Predicated region
      $region21: #{forward.1} parent=11 // pred_check
        %p255 = pneg %p182
      $region22: #{forward.1} parent=11 // pred_check_branch
        %257 = sbr.rel (%p255) target = $region24
      $region23: #{forward.1} parent=11 // pred_region
        _
      $region24: #{forward.1} parent=11 // pred_fallthru
        _
    $region12: #{forward.1} parent=5 // pred_fallthru
      _
    %p258 = scmp.lt.s32.totalorder %s15, 2
    // Predicated region
    $region25: #{forward.1} parent=5 // pred_check
      %p259 = pneg %p258
    $region26: #{forward.1} parent=5 // pred_check_branch
      %261 = sbr.rel (%p259) target = $region28
    $region27: #{forward.1} parent=5 // pred_region
      // Predicated region
      $region29: #{forward.1} parent=27 // pred_check
        %p262 = pneg %p35
      $region30: #{forward.1} parent=27 // pred_check_branch
        %264 = sbr.rel (%p262) target = $region32
      $region31: #{forward.1} parent=27 // pred_region
        %p265 = scmp.lt.s32.totalorder %s15, 1
        %s266 = scalar_select %p265, %s15, 1
        %s267 = smul.addr %s266, 8
        %s268 = scalar_lea.vmem %s0, %s267
      $region32: #{forward.1} parent=27 // pred_fallthru
        _
      // Predicated region
      $region33: #{forward.1} parent=27 // pred_check
        %p269 = pneg %p61
      $region34: #{forward.1} parent=27 // pred_check_branch
        %271 = sbr.rel (%p269) target = $region36
      $region35: #{forward.1} parent=27 // pred_region
        %p272 = scmp.lt.s32.totalorder %s15, 1
        %s273 = scalar_select %p272, %s15, 1
        %s274 = smul.addr %s273, 8
        %s275 = scalar_lea.vmem %s1, %s274
      $region36: #{forward.1} parent=27 // pred_fallthru
        _
      // Predicated region
      $region37: #{forward.1} parent=27 // pred_check
        %p276 = pneg %p87
      $region38: #{forward.1} parent=27 // pred_check_branch
        %278 = sbr.rel (%p276) target = $region40
      $region39: #{forward.1} parent=27 // pred_region
        %p279 = scmp.lt.s32.totalorder %s15, 1
        %s280 = scalar_select %p279, %s15, 1
        %s281 = smul.addr %s280, 8
        %s282 = scalar_lea.vmem %s2, %s281
      $region40: #{forward.1} parent=27 // pred_fallthru
        _
      // Predicated region
      $region41: #{forward.1} parent=27 // pred_check
        %p283 = pneg %p113
      $region42: #{forward.1} parent=27 // pred_check_branch
        %285 = sbr.rel (%p283) target = $region44
      $region43: #{forward.1} parent=27 // pred_region
        %p286 = scmp.lt.s32.totalorder %s15, 1
        %s287 = scalar_select %p286, %s15, 1
        %s288 = smul.addr %s287, 8
        %s289 = scalar_lea.vmem %s3, %s288
      $region44: #{forward.1} parent=27 // pred_fallthru
        _
    $region28: #{forward.1} parent=5 // pred_fallthru
      _
    %p290 = scmp.le.s32.totalorder 1, %s15
    %p291 = scmp.lt.s32.totalorder %s15, 3
    %p292 = pnand %p290, %p291
    %p293 = pneg %p292
    // Predicated region
    $region45: #{forward.1} parent=5 // pred_check
      _
    $region46: #{forward.1} parent=5 // pred_check_branch
      %295 = sbr.rel (%p292) target = $region48
    $region47: #{forward.1} parent=5 // pred_region
      %s296 = ssub.s32 %s15, 1
      %p297 = scmp.lt.s32.totalorder %s20, 1
      %s298 = scalar_select %p297, %s20, 1
      %s299 = smul.addr %s298, 8
      %s300 = scalar_lea.vmem %s0, %s299
      %p301 = pneg %p41
      %p302 = pneg %p38
      %p303 = scmp.lt.s32.totalorder %s20, 1
      %s304 = scalar_select %p303, %s20, 1
      %s305 = smul.addr %s304, 8
      %s306 = scalar_lea.vmem %s1, %s305
      %p307 = pneg %p67
      %p308 = pneg %p64
      %p309 = scmp.lt.s32.totalorder %s20, 1
      %s310 = scalar_select %p309, %s20, 1
      %s311 = smul.addr %s310, 8
      %s312 = scalar_lea.vmem %s2, %s311
      %p313 = pneg %p93
      %p314 = pneg %p90
      %p315 = scmp.lt.s32.totalorder %s20, 1
      %s316 = scalar_select %p315, %s20, 1
      %s317 = smul.addr %s316, 8
      %s318 = scalar_lea.vmem %s3, %s317
      %p319 = pneg %p119
      %p320 = pneg %p116
      %p321 = pneg %p140
      %p322 = pneg %p137
      %p323 = pneg %p161
      %p324 = pneg %p158
      %p325 = pneg %p182
      %p326 = pneg %p179
      %p327 = pneg %p208
      %p328 = pneg %p205
      %p329 = scmp.lt.s32.totalorder %s20, 1
      %s330 = scalar_select %p329, %s20, 1
      %s331 = smul.addr %s330, 8
      %s332 = scalar_lea.vmem %s7, %s331
      %p333 = pneg %p234
      %p334 = pneg %p231
      %p335 = scmp.lt.s32.totalorder %s20, 1
      %s336 = scalar_select %p335, %s20, 1
      %s337 = smul.addr %s336, 8
      %s338 = scalar_lea.vmem %s8, %s337
      %p339 = scmp.lt.s32.totalorder %s20, 1
      %s340 = scalar_select %p339, %s20, 1
      %s341 = smul.addr %s340, 8
      %s342 = scalar_lea.vmem %s0, %s341
      %p343 = scmp.lt.s32.totalorder %s20, 1
      %s344 = scalar_select %p343, %s20, 1
      %s345 = smul.addr %s344, 8
      %s346 = scalar_lea.vmem %s1, %s345
      %p347 = scmp.lt.s32.totalorder %s20, 1
      %s348 = scalar_select %p347, %s20, 1
      %s349 = smul.addr %s348, 8
      %s350 = scalar_lea.vmem %s2, %s349
      %p351 = scmp.lt.s32.totalorder %s20, 1
      %s352 = scalar_select %p351, %s20, 1
      %s353 = smul.addr %s352, 8
      %s354 = scalar_lea.vmem %s3, %s353
      %p355 = scmp.lt.s32.totalorder %s20, 1
      %s356 = scalar_select %p355, %s20, 1
      %s357 = smul.addr %s356, 8
      %s358 = scalar_lea.vmem %s7, %s357
      %p359 = scmp.lt.s32.totalorder %s20, 1
      %s360 = scalar_select %p359, %s20, 1
      %s361 = smul.addr %s360, 8
      %s362 = scalar_lea.vmem %s8, %s361
      %v364 = vld [vmem:[%s342] sm:$0xff]
      %v365 = vld [vmem:[%s5] sm:$0xf]
      %v366 = vld [vmem:[%s5 + $0x4] sm:$0xf]
      %v367 = vld [vmem:[%s5 + $0x8] sm:$0xf]
      %v368 = vld [vmem:[%s5 + $0xc] sm:$0xf]
      %v369 = vld [vmem:[%s5 + $0x10] sm:$0xf]
      %v370 = vld [vmem:[%s5 + $0x14] sm:$0xf]
      %v371 = vld [vmem:[%s5 + $0x18] sm:$0x3]
      %v372 = vpack.c.bf16 %v364, %v364
      %v373 = vld [vmem:[%s4] sm:$0x1]
      %v374 = vperm.slane %v373, 0
      %v382 = vunpack.c.l.b16 %v365
      %v383 = vunpack.c.l.b16 %v366
      %v384 = vunpack.c.l.b16 %v367
      %v385 = vunpack.c.l.b16 %v368
      %v386 = vunpack.c.l.b16 %v369
      %v387 = vunpack.c.l.b16 %v370
      %v388 = vunpack.c.l.b16 %v371
      %v389 = vpack.c.b16 %v383, %v382
      %v390 = vpack.c.b16 %v385, %v384
      %v391 = vpack.c.b16 %v387, %v386
      %v392 = vpack.c.b16 %v388, %v388
      %vm396 = vcmask 424960
      %v398 = vsel %vm396, %v372, 0
      %vm400 = vcmask 1041408
      %v402 = vsel %vm400, %v392, 0
      %404 = vmatpush.bf16.msra.mxu0 0
      %405 = vmatpush.bf16.msra.mxu0 0
      %406 = vmatpush.bf16.msra.mxu0 0
      %407 = vmatpush.bf16.msra.mxu0 0
      %408 = vmatpush.bf16.msra.mxu0 %v402
      %409 = vmatpush.bf16.msra.mxu0 %v391
      %410 = vmatpush.bf16.msra.mxu0 %v390
      %411 = vmatpush.bf16.msra.mxu0 %v389
      %412 = vmatmul.bf16.gmra.mxu0 %v398
      %v413 = vpop.f32.mrf.mxu0
      %v414 = vadd.f32 %v374, %v413
      %v415 = vpop.f32.mrf.mxu0
      %416 = vdwg.mxu0
      %v417 = vld [vmem:[%s346] sm:$0xff]
      %v418 = vadd.f32 %v414, %v417
      %v419 = vld [vmem:[%s4 + $0x1] sm:$0x1]
      %v420 = vld [vmem:[%s4 + $0x2] sm:$0x1]
      %vm421 = vcmask 261120
      %v422 = vsel %vm421, %v418, 0.0
      %423 = vadd.xlane.f32.xlu0 %v422
      %v424 = vpop.xlane.xlu0 %423
      %v425 = vrcp.pop 32.0
      %v426 = vmul.f32 32.0, %v425
      %v427 = vsub.f32 1.0, %v426
      %v428 = vmul.f32 %v425, %v427
      %v429 = vadd.f32 %v425, %v428
      %vm430 = vweird.f32 %v425
      %v431 = vsel %vm430, %v425, %v429
      %v432 = vmul.f32 %v424, %v431
      %v433 = vsub.f32 %v418, %v432
      %v434 = vmul.f32 %v433, %v433
      %v435 = vsel %vm421, %v434, 0.0
      %436 = vadd.xlane.f32.xlu0 %v435
      %v437 = vpop.xlane.xlu0 %436
      %v438 = vmul.f32 %v437, %v431
      %v439 = vadd.f32 %v438, 1e-05
      %v440 = vrsqrt.pop %v439
      %v441 = vmul.f32 %v440, %v439
      %v442 = vmul.f32 %v441, %v440
      %v443 = vmul.f32 0.5, %v442
      %v444 = vsub.f32 1.5, %v443
      %v445 = vmul.f32 %v440, %v444
      %vm446 = vweird.f32 %v439
      %vm447 = vweird.f32 %v440
      %vm448 = vmor %vm446, %vm447
      %v449 = vsel %vm448, %v440, %v445
      %v450 = vmul.f32 %v433, %v449
      %v451 = vperm.slane %v419, 0
      %v452 = vmul.f32 %v450, %v451
      %v453 = vperm.slane %v420, 0
      %v454 = vadd.f32 %v452, %v453
      %v455 = vld [vmem:[%s350] sm:$0xff]
      %v456 = vadd.f32 %v454, %v455
      %v457 = vld [vmem:[%s4 + $0x3] sm:$0x1]
      %v458 = vld [vmem:[%s4 + $0x4] sm:$0x1]
      %v459 = vsel %vm421, %v456, 0.0
      %460 = vadd.xlane.f32.xlu0 %v459
      %v461 = vpop.xlane.xlu0 %460
      %v462 = vmul.f32 %v461, %v431
      %v463 = vsub.f32 %v456, %v462
      %v464 = vmul.f32 %v463, %v463
      %v465 = vsel %vm421, %v464, 0.0
      %466 = vadd.xlane.f32.xlu0 %v465
      %v467 = vpop.xlane.xlu0 %466
      %v468 = vmul.f32 %v467, %v431
      %v469 = vadd.f32 %v468, 1e-12
      %v470 = vrsqrt.pop %v469
      %v471 = vmul.f32 %v470, %v469
      %v472 = vmul.f32 %v471, %v470
      %v473 = vmul.f32 0.5, %v472
      %v474 = vsub.f32 1.5, %v473
      %v475 = vmul.f32 %v470, %v474
      %vm476 = vweird.f32 %v469
      %vm477 = vweird.f32 %v470
      %vm478 = vmor %vm476, %vm477
      %v479 = vsel %vm478, %v470, %v475
      %v480 = vmul.f32 %v463, %v479
      %v481 = vperm.slane %v457, 0
      %v482 = vmul.f32 %v480, %v481
      %v483 = vperm.slane %v458, 0
      %v484 = vadd.f32 %v482, %v483
      %v485 = vld [vmem:[%s354] sm:$0xff]
      %v486 = vld [vmem:[%s6] sm:$0xf]
      %v487 = vld [vmem:[%s6 + $0x4] sm:$0xf]
      %v488 = vld [vmem:[%s6 + $0x8] sm:$0xf]
      %v489 = vld [vmem:[%s6 + $0xc] sm:$0xf]
      %v490 = vpack.c.bf16 %v484, %v484
      %v491 = vld [vmem:[%s4 + $0xd] sm:$0x1]
      %v492 = vperm.slane %v491, 0
      %v497 = vunpack.c.l.b16 %v486
      %v498 = vunpack.c.l.b16 %v487
      %v499 = vunpack.c.l.b16 %v488
      %v500 = vunpack.c.l.b16 %v489
      %v501 = vpack.c.b16 %v498, %v497
      %v502 = vpack.c.b16 %v500, %v499
      %v506 = vsel %vm421, %v490, 0
      %508 = vmatpush.bf16.msra.mxu0 0
      %509 = vmatpush.bf16.msra.mxu0 0
      %510 = vmatpush.bf16.msra.mxu0 0
      %511 = vmatpush.bf16.msra.mxu0 0
      %512 = vmatpush.bf16.msra.mxu0 0
      %513 = vmatpush.bf16.msra.mxu0 0
      %514 = vmatpush.bf16.msra.mxu0 %v502
      %515 = vmatpush.bf16.msra.mxu0 %v501
      %516 = vmatmul.bf16.gmra.mxu0 %v506
      %v517 = vpop.f32.mrf.mxu0
      %v518 = vadd.f32 %v492, %v517
      %v519 = vpop.f32.mrf.mxu0
      %520 = vdwg.mxu0
      %v521 = vmul.f32 %v518, 0.35355338
      %523 = vrot.lane.b32.xlu0 %v518, 96
      %v524 = vpop.permute.xlu0 %523
      %vm525 = vcmask 64512
      %v527 = vsel %vm525, %v521, 0
      %v529 = vsel %vm525, %v524, 0
      %531 = vmatpush.xpose.msra.mxu0 0.0
      %532 = vmatpush.xpose.msra.mxu0 0.0
      %533 = vmatpush.xpose.msra.mxu0 0.0
      %534 = vmatpush.xpose.msra.mxu0 0.0
      %535 = vmatpush.xpose.msra.mxu0 0.0
      %536 = vmatpush.xpose.msra.mxu0 0.0
      %537 = vmatpush.xpose.msra.mxu0 0.0
      %538 = vmatpush.xpose.msra.mxu0 0.0
      %539 = vmatpush.xpose.msra.mxu0 0.0
      %540 = vmatpush.xpose.msra.mxu0 0.0
      %541 = vmatpush.xpose.msra.mxu0 0.0
      %542 = vmatpush.xpose.msra.mxu0 0.0
      %543 = vmatpush.xpose.msra.mxu0 0.0
      %544 = vmatpush.xpose.msra.mxu0 0.0
      %545 = vmatpush.xpose.msra.mxu0 0.0
      %546 = vmatpush.xpose.msra.mxu0 %v529
      %547 = vmatmul.f32.gmra.mxu0 %v527
      %v548 = vpop.f32.mrf.mxu0
      %v549 = vadd.f32 %v485, %v548
      %550 = vdwg.mxu0
      %v551 = vsel %vm525, %v549, -inf
      %552 = vmax.xlane.f32.xlu0 %v551
      %v553 = vpop.xlane.xlu0 %552
      %v554 = vsub.f32 %v549, %v553
      %v555 = vmul.f32 %v554, 1.442695
      %v556 = vpow.pop %v555
      %v557 = vsel %vm525, %v556, 0.0
      %558 = vadd.xlane.f32.xlu0 %v557
      %v559 = vpop.xlane.xlu0 %558
      %v560 = vrcp.pop %v559
      %v561 = vmul.f32 %v559, %v560
      %v562 = vsub.f32 1.0, %v561
      %v563 = vmul.f32 %v560, %v562
      %v564 = vadd.f32 %v560, %v563
      %vm565 = vweird.f32 %v559
      %vm566 = vweird.f32 %v560
      %vm567 = vmor %vm565, %vm566
      %v568 = vsel %vm567, %v560, %v564
      %v569 = vand.u32 2147483647, %v559
      %vm570 = vcmp.eq.f32.partialorder %v569, 8.507059e+37
      %v571 = vand.u32 %v559, 2147483648
      %v572 = vor.u32 1.1754944e-38, %v571
      %v573 = vsel %vm570, %v572, %v568
      %v574 = vmul.f32 %v556, %v573
      %575 = vrot.lane.b32.xlu0 %v518, 64
      %v576 = vpop.permute.xlu0 %575
      %v579 = vsel %vm525, %v574, 0
      %581 = vmatpush.msra.mxu0 0.0
      %582 = vmatpush.msra.mxu0 0.0
      %583 = vmatpush.msra.mxu0 0.0
      %584 = vmatpush.msra.mxu0 0.0
      %585 = vmatpush.msra.mxu0 0.0
      %586 = vmatpush.msra.mxu0 0.0
      %587 = vmatpush.msra.mxu0 0.0
      %588 = vmatpush.msra.mxu0 0.0
      %589 = vmatpush.msra.mxu0 0.0
      %590 = vmatpush.msra.mxu0 0.0
      %591 = vmatpush.msra.mxu0 0.0
      %592 = vmatpush.msra.mxu0 0.0
      %593 = vmatpush.msra.mxu0 0.0
      %594 = vmatpush.msra.mxu0 0.0
      %595 = vmatpush.msra.mxu0 0.0
      %596 = vmatpush.msra.mxu0 %v576
      %597 = vmatmul.f32.gmra.mxu0 %v579
      %v598 = vpop.f32.mrf.mxu0
      %v599 = vadd.f32 0.0, %v598
      %600 = vdwg.mxu0
      %601 = vrot.lane.b32.xlu0 %v521, 120
      %v602 = vpop.permute.xlu0 %601
      %603 = vrot.lane.b32.xlu0 %v518, 88
      %v604 = vpop.permute.xlu0 %603
      %v605 = vsel %vm525, %v602, 0
      %v607 = vsel %vm525, %v604, 0
      %609 = vmatpush.xpose.msra.mxu0 0.0
      %610 = vmatpush.xpose.msra.mxu0 0.0
      %611 = vmatpush.xpose.msra.mxu0 0.0
      %612 = vmatpush.xpose.msra.mxu0 0.0
      %613 = vmatpush.xpose.msra.mxu0 0.0
      %614 = vmatpush.xpose.msra.mxu0 0.0
      %615 = vmatpush.xpose.msra.mxu0 0.0
      %616 = vmatpush.xpose.msra.mxu0 0.0
      %617 = vmatpush.xpose.msra.mxu0 0.0
      %618 = vmatpush.xpose.msra.mxu0 0.0
      %619 = vmatpush.xpose.msra.mxu0 0.0
      %620 = vmatpush.xpose.msra.mxu0 0.0
      %621 = vmatpush.xpose.msra.mxu0 0.0
      %622 = vmatpush.xpose.msra.mxu0 0.0
      %623 = vmatpush.xpose.msra.mxu0 0.0
      %624 = vmatpush.xpose.msra.mxu0 %v607
      %625 = vmatmul.f32.gmra.mxu0 %v605
      %v626 = vpop.f32.mrf.mxu0
      %v627 = vadd.f32 %v485, %v626
      %628 = vdwg.mxu0
      %v629 = vsel %vm525, %v627, -inf
      %630 = vmax.xlane.f32.xlu0 %v629
      %v631 = vpop.xlane.xlu0 %630
      %v632 = vsub.f32 %v627, %v631
      %v633 = vmul.f32 %v632, 1.442695
      %v634 = vpow.pop %v633
      %v635 = vsel %vm525, %v634, 0.0
      %636 = vadd.xlane.f32.xlu0 %v635
      %v637 = vpop.xlane.xlu0 %636
      %v638 = vrcp.pop %v637
      %v639 = vmul.f32 %v637, %v638
      %v640 = vsub.f32 1.0, %v639
      %v641 = vmul.f32 %v638, %v640
      %v642 = vadd.f32 %v638, %v641
      %vm643 = vweird.f32 %v637
      %vm644 = vweird.f32 %v638
      %vm645 = vmor %vm643, %vm644
      %v646 = vsel %vm645, %v638, %v642
      %v647 = vand.u32 2147483647, %v637
      %vm648 = vcmp.eq.f32.partialorder %v647, 8.507059e+37
      %v649 = vand.u32 %v637, 2147483648
      %v650 = vor.u32 1.1754944e-38, %v649
      %v651 = vsel %vm648, %v650, %v646
      %v652 = vmul.f32 %v634, %v651
      %653 = vrot.lane.b32.xlu0 %v518, 56
      %v654 = vpop.permute.xlu0 %653
      %v657 = vsel %vm525, %v652, 0
      %659 = vmatpush.msra.mxu0 0.0
      %660 = vmatpush.msra.mxu0 0.0
      %661 = vmatpush.msra.mxu0 0.0
      %662 = vmatpush.msra.mxu0 0.0
      %663 = vmatpush.msra.mxu0 0.0
      %664 = vmatpush.msra.mxu0 0.0
      %665 = vmatpush.msra.mxu0 0.0
      %666 = vmatpush.msra.mxu0 0.0
      %667 = vmatpush.msra.mxu0 0.0
      %668 = vmatpush.msra.mxu0 0.0
      %669 = vmatpush.msra.mxu0 0.0
      %670 = vmatpush.msra.mxu0 0.0
      %671 = vmatpush.msra.mxu0 0.0
      %672 = vmatpush.msra.mxu0 0.0
      %673 = vmatpush.msra.mxu0 0.0
      %674 = vmatpush.msra.mxu0 %v654
      %675 = vmatmul.f32.gmra.mxu0 %v657
      %v676 = vpop.f32.mrf.mxu0
      %v677 = vadd.f32 0.0, %v676
      %678 = vdwg.mxu0
      %679 = vrot.lane.b32.xlu0 %v521, 112
      %v680 = vpop.permute.xlu0 %679
      %681 = vrot.lane.b32.xlu0 %v518, 80
      %v682 = vpop.permute.xlu0 %681
      %v683 = vsel %vm525, %v680, 0
      %v685 = vsel %vm525, %v682, 0
      %687 = vmatpush.xpose.msra.mxu0 0.0
      %688 = vmatpush.xpose.msra.mxu0 0.0
      %689 = vmatpush.xpose.msra.mxu0 0.0
      %690 = vmatpush.xpose.msra.mxu0 0.0
      %691 = vmatpush.xpose.msra.mxu0 0.0
      %692 = vmatpush.xpose.msra.mxu0 0.0
      %693 = vmatpush.xpose.msra.mxu0 0.0
      %694 = vmatpush.xpose.msra.mxu0 0.0
      %695 = vmatpush.xpose.msra.mxu0 0.0
      %696 = vmatpush.xpose.msra.mxu0 0.0
      %697 = vmatpush.xpose.msra.mxu0 0.0
      %698 = vmatpush.xpose.msra.mxu0 0.0
      %699 = vmatpush.xpose.msra.mxu0 0.0
      %700 = vmatpush.xpose.msra.mxu0 0.0
      %701 = vmatpush.xpose.msra.mxu0 0.0
      %702 = vmatpush.xpose.msra.mxu0 %v685
      %703 = vmatmul.f32.gmra.mxu0 %v683
      %v704 = vpop.f32.mrf.mxu0
      %v705 = vadd.f32 %v485, %v704
      %706 = vdwg.mxu0
      %v707 = vsel %vm525, %v705, -inf
      %708 = vmax.xlane.f32.xlu0 %v707
      %v709 = vpop.xlane.xlu0 %708
      %v710 = vsub.f32 %v705, %v709
      %v711 = vmul.f32 %v710, 1.442695
      %v712 = vpow.pop %v711
      %v713 = vsel %vm525, %v712, 0.0
      %714 = vadd.xlane.f32.xlu0 %v713
      %v715 = vpop.xlane.xlu0 %714
      %v716 = vrcp.pop %v715
      %v717 = vmul.f32 %v715, %v716
      %v718 = vsub.f32 1.0, %v717
      %v719 = vmul.f32 %v716, %v718
      %v720 = vadd.f32 %v716, %v719
      %vm721 = vweird.f32 %v715
      %vm722 = vweird.f32 %v716
      %vm723 = vmor %vm721, %vm722
      %v724 = vsel %vm723, %v716, %v720
      %v725 = vand.u32 2147483647, %v715
      %vm726 = vcmp.eq.f32.partialorder %v725, 8.507059e+37
      %v727 = vand.u32 %v715, 2147483648
      %v728 = vor.u32 1.1754944e-38, %v727
      %v729 = vsel %vm726, %v728, %v724
      %v730 = vmul.f32 %v712, %v729
      %731 = vrot.lane.b32.xlu0 %v518, 48
      %v732 = vpop.permute.xlu0 %731
      %v735 = vsel %vm525, %v730, 0
      %737 = vmatpush.msra.mxu0 0.0
      %738 = vmatpush.msra.mxu0 0.0
      %739 = vmatpush.msra.mxu0 0.0
      %740 = vmatpush.msra.mxu0 0.0
      %741 = vmatpush.msra.mxu0 0.0
      %742 = vmatpush.msra.mxu0 0.0
      %743 = vmatpush.msra.mxu0 0.0
      %744 = vmatpush.msra.mxu0 0.0
      %745 = vmatpush.msra.mxu0 0.0
      %746 = vmatpush.msra.mxu0 0.0
      %747 = vmatpush.msra.mxu0 0.0
      %748 = vmatpush.msra.mxu0 0.0
      %749 = vmatpush.msra.mxu0 0.0
      %750 = vmatpush.msra.mxu0 0.0
      %751 = vmatpush.msra.mxu0 0.0
      %752 = vmatpush.msra.mxu0 %v732
      %753 = vmatmul.f32.gmra.mxu0 %v735
      %v754 = vpop.f32.mrf.mxu0
      %v755 = vadd.f32 0.0, %v754
      %756 = vdwg.mxu0
      %757 = vrot.lane.b32.xlu0 %v521, 104
      %v758 = vpop.permute.xlu0 %757
      %759 = vrot.lane.b32.xlu0 %v518, 72
      %v760 = vpop.permute.xlu0 %759
      %v761 = vsel %vm525, %v758, 0
      %v763 = vsel %vm525, %v760, 0
      %765 = vmatpush.xpose.msra.mxu0 0.0
      %766 = vmatpush.xpose.msra.mxu0 0.0
      %767 = vmatpush.xpose.msra.mxu0 0.0
      %768 = vmatpush.xpose.msra.mxu0 0.0
      %769 = vmatpush.xpose.msra.mxu0 0.0
      %770 = vmatpush.xpose.msra.mxu0 0.0
      %771 = vmatpush.xpose.msra.mxu0 0.0
      %772 = vmatpush.xpose.msra.mxu0 0.0
      %773 = vmatpush.xpose.msra.mxu0 0.0
      %774 = vmatpush.xpose.msra.mxu0 0.0
      %775 = vmatpush.xpose.msra.mxu0 0.0
      %776 = vmatpush.xpose.msra.mxu0 0.0
      %777 = vmatpush.xpose.msra.mxu0 0.0
      %778 = vmatpush.xpose.msra.mxu0 0.0
      %779 = vmatpush.xpose.msra.mxu0 0.0
      %780 = vmatpush.xpose.msra.mxu0 %v763
      %781 = vmatmul.f32.gmra.mxu0 %v761
      %v782 = vpop.f32.mrf.mxu0
      %v783 = vadd.f32 %v485, %v782
      %784 = vdwg.mxu0
      %v785 = vsel %vm525, %v783, -inf
      %786 = vmax.xlane.f32.xlu0 %v785
      %v787 = vpop.xlane.xlu0 %786
      %v788 = vsub.f32 %v783, %v787
      %v789 = vmul.f32 %v788, 1.442695
      %v790 = vpow.pop %v789
      %v791 = vsel %vm525, %v790, 0.0
      %792 = vadd.xlane.f32.xlu0 %v791
      %v793 = vpop.xlane.xlu0 %792
      %v794 = vrcp.pop %v793
      %v795 = vmul.f32 %v793, %v794
      %v796 = vsub.f32 1.0, %v795
      %v797 = vmul.f32 %v794, %v796
      %v798 = vadd.f32 %v794, %v797
      %vm799 = vweird.f32 %v793
      %vm800 = vweird.f32 %v794
      %vm801 = vmor %vm799, %vm800
      %v802 = vsel %vm801, %v794, %v798
      %v803 = vand.u32 2147483647, %v793
      %vm804 = vcmp.eq.f32.partialorder %v803, 8.507059e+37
      %v805 = vand.u32 %v793, 2147483648
      %v806 = vor.u32 1.1754944e-38, %v805
      %v807 = vsel %vm804, %v806, %v802
      %v808 = vmul.f32 %v790, %v807
      %809 = vrot.lane.b32.xlu0 %v518, 40
      %v810 = vpop.permute.xlu0 %809
      %v813 = vsel %vm525, %v808, 0
      %815 = vmatpush.msra.mxu0 0.0
      %816 = vmatpush.msra.mxu0 0.0
      %817 = vmatpush.msra.mxu0 0.0
      %818 = vmatpush.msra.mxu0 0.0
      %819 = vmatpush.msra.mxu0 0.0
      %820 = vmatpush.msra.mxu0 0.0
      %821 = vmatpush.msra.mxu0 0.0
      %822 = vmatpush.msra.mxu0 0.0
      %823 = vmatpush.msra.mxu0 0.0
      %824 = vmatpush.msra.mxu0 0.0
      %825 = vmatpush.msra.mxu0 0.0
      %826 = vmatpush.msra.mxu0 0.0
      %827 = vmatpush.msra.mxu0 0.0
      %828 = vmatpush.msra.mxu0 0.0
      %829 = vmatpush.msra.mxu0 0.0
      %830 = vmatpush.msra.mxu0 %v810
      %831 = vmatmul.f32.gmra.mxu0 %v813
      %v832 = vpop.f32.mrf.mxu0
      %v833 = vadd.f32 0.0, %v832
      %834 = vdwg.mxu0
      %836 = vrot.lane.b32.xlu0 %v677, 8
      %v837 = vpop.permute.xlu0 %836
      %840 = vrot.lane.b32.xlu0 %v755, 16
      %v841 = vpop.permute.xlu0 %840
      %844 = vrot.lane.b32.xlu0 %v833, 24
      %v845 = vpop.permute.xlu0 %844
      %v847 = vsel %vm525, %v599, %v837
      %vm848 = vcmask 130048
      %v849 = vsel %vm848, %v847, %v841
      %vm850 = vcmask 195584
      %v851 = vsel %vm850, %v849, %v845
      %v852 = vld [vmem:[%s6 + $0x10] sm:$0xf]
      %v853 = vld [vmem:[%s6 + $0x14] sm:$0xf]
      %v854 = vld [vmem:[%s6 + $0x18] sm:$0xf]
      %v855 = vld [vmem:[%s6 + $0x1c] sm:$0xf]
      %v856 = vpack.c.bf16 %v851, %v851
      %v857 = vld [vmem:[%s4 + $0xe] sm:$0x1]
      %v858 = vperm.slane %v857, 0
      %v863 = vunpack.c.l.b16 %v852
      %v864 = vunpack.c.l.b16 %v853
      %v865 = vunpack.c.l.b16 %v854
      %v866 = vunpack.c.l.b16 %v855
      %v867 = vpack.c.b16 %v864, %v863
      %v868 = vpack.c.b16 %v866, %v865
      %v872 = vsel %vm421, %v856, 0
      %874 = vmatpush.bf16.msra.mxu0 0
      %875 = vmatpush.bf16.msra.mxu0 0
      %876 = vmatpush.bf16.msra.mxu0 0
      %877 = vmatpush.bf16.msra.mxu0 0
      %878 = vmatpush.bf16.msra.mxu0 0
      %879 = vmatpush.bf16.msra.mxu0 0
      %880 = vmatpush.bf16.msra.mxu0 %v868
      %881 = vmatpush.bf16.msra.mxu0 %v867
      %882 = vmatmul.bf16.gmra.mxu0 %v872
      %v883 = vpop.f32.mrf.mxu0
      %v884 = vadd.f32 %v858, %v883
      %v885 = vpop.f32.mrf.mxu0
      %886 = vdwg.mxu0
      %v887 = vadd.f32 %v884, %v484
      %v888 = vld [vmem:[%s4 + $0xf] sm:$0x1]
      %v889 = vld [vmem:[%s4 + $0x10] sm:$0x1]
      %v890 = vsel %vm421, %v887, 0.0
      %891 = vadd.xlane.f32.xlu0 %v890
      %v892 = vpop.xlane.xlu0 %891
      %v893 = vmul.f32 %v892, %v431
      %v894 = vsub.f32 %v887, %v893
      %v895 = vmul.f32 %v894, %v894
      %v896 = vsel %vm421, %v895, 0.0
      %897 = vadd.xlane.f32.xlu0 %v896
      %v898 = vpop.xlane.xlu0 %897
      %v899 = vmul.f32 %v898, %v431
      %v900 = vadd.f32 %v899, 1e-12
      %v901 = vrsqrt.pop %v900
      %v902 = vmul.f32 %v901, %v900
      %v903 = vmul.f32 %v902, %v901
      %v904 = vmul.f32 0.5, %v903
      %v905 = vsub.f32 1.5, %v904
      %v906 = vmul.f32 %v901, %v905
      %vm907 = vweird.f32 %v900
      %vm908 = vweird.f32 %v901
      %vm909 = vmor %vm907, %vm908
      %v910 = vsel %vm909, %v901, %v906
      %v911 = vmul.f32 %v894, %v910
      %v912 = vperm.slane %v888, 0
      %v913 = vmul.f32 %v911, %v912
      %v914 = vperm.slane %v889, 0
      %v915 = vadd.f32 %v913, %v914
      %v916 = vld [vmem:[%s6 + $0x20] sm:$0xf]
      %v917 = vld [vmem:[%s6 + $0x24] sm:$0xf]
      %v918 = vld [vmem:[%s6 + $0x28] sm:$0xf]
      %v919 = vld [vmem:[%s6 + $0x2c] sm:$0xf]
      %v920 = vpack.c.bf16 %v915, %v915
      %v921 = vld [vmem:[%s4 + $0x11] sm:$0x1]
      %v922 = vperm.slane %v921, 0
      %v927 = vunpack.c.l.b16 %v916
      %v928 = vunpack.c.l.b16 %v917
      %v929 = vunpack.c.l.b16 %v918
      %v930 = vunpack.c.l.b16 %v919
      %v931 = vpack.c.b16 %v928, %v927
      %v932 = vpack.c.b16 %v930, %v929
      %v936 = vsel %vm421, %v920, 0
      %938 = vmatpush.bf16.msra.mxu0 0
      %939 = vmatpush.bf16.msra.mxu0 0
      %940 = vmatpush.bf16.msra.mxu0 0
      %941 = vmatpush.bf16.msra.mxu0 0
      %942 = vmatpush.bf16.msra.mxu0 0
      %943 = vmatpush.bf16.msra.mxu0 0
      %944 = vmatpush.bf16.msra.mxu0 %v932
      %945 = vmatpush.bf16.msra.mxu0 %v931
      %946 = vmatmul.bf16.gmra.mxu0 %v936
      %v947 = vpop.f32.mrf.mxu0
      %v948 = vadd.f32 %v922, %v947
      %v949 = vpop.f32.mrf.mxu0
      %950 = vdwg.mxu0
      %v951 = vmul.f32 %v948, %v948
      %v952 = vmul.f32 %v948, %v951
      %v953 = vmul.f32 %v952, 0.044715
      %v954 = vadd.f32 %v948, %v953
      %v955 = vmul.f32 %v954, 0.7978846
      %v956 = vtanh.pop %v955
      %v957 = vadd.f32 %v956, 1.0
      %v958 = vmul.f32 %v957, 0.5
      %v959 = vmul.f32 %v948, %v958
      %v960 = vld [vmem:[%s6 + $0x30] sm:$0xf]
      %v961 = vld [vmem:[%s6 + $0x34] sm:$0xf]
      %v962 = vld [vmem:[%s6 + $0x38] sm:$0xf]
      %v963 = vld [vmem:[%s6 + $0x3c] sm:$0xf]
      %v964 = vld [vmem:[%s6 + $0x40] sm:$0xf]
      %v965 = vld [vmem:[%s6 + $0x44] sm:$0xf]
      %v966 = vld [vmem:[%s6 + $0x48] sm:$0xf]
      %v967 = vld [vmem:[%s6 + $0x4c] sm:$0xf]
      %v968 = vld [vmem:[%s6 + $0x50] sm:$0xf]
      %v969 = vld [vmem:[%s6 + $0x54] sm:$0xf]
      %v970 = vld [vmem:[%s6 + $0x58] sm:$0xf]
      %v971 = vld [vmem:[%s6 + $0x5c] sm:$0xf]
      %v972 = vld [vmem:[%s6 + $0x60] sm:$0xf]
      %v973 = vld [vmem:[%s6 + $0x64] sm:$0xf]
      %v974 = vld [vmem:[%s6 + $0x68] sm:$0xf]
      %v975 = vld [vmem:[%s6 + $0x6c] sm:$0xf]
      %v976 = vpack.c.bf16 %v959, %v959
      %v977 = vld [vmem:[%s4 + $0x12] sm:$0x1]
      %v978 = vperm.slane %v977, 0
      %v995 = vunpack.c.l.b16 %v960
      %v996 = vunpack.c.l.b16 %v961
      %v997 = vunpack.c.l.b16 %v962
      %v998 = vunpack.c.l.b16 %v963
      %v999 = vunpack.c.l.b16 %v964
      %v1000 = vunpack.c.l.b16 %v965
      %v1001 = vunpack.c.l.b16 %v966
      %v1002 = vunpack.c.l.b16 %v967
      %v1003 = vunpack.c.l.b16 %v968
      %v1004 = vunpack.c.l.b16 %v969
      %v1005 = vunpack.c.l.b16 %v970
      %v1006 = vunpack.c.l.b16 %v971
      %v1007 = vunpack.c.l.b16 %v972
      %v1008 = vunpack.c.l.b16 %v973
      %v1009 = vunpack.c.l.b16 %v974
      %v1010 = vunpack.c.l.b16 %v975
      %v1011 = vpack.c.b16 %v996, %v995
      %v1012 = vpack.c.b16 %v998, %v997
      %v1013 = vpack.c.b16 %v1000, %v999
      %v1014 = vpack.c.b16 %v1002, %v1001
      %v1015 = vpack.c.b16 %v1004, %v1003
      %v1016 = vpack.c.b16 %v1006, %v1005
      %v1017 = vpack.c.b16 %v1008, %v1007
      %v1018 = vpack.c.b16 %v1010, %v1009
      %1027 = vmatpush.bf16.msra.mxu0 %v1018
      %1028 = vmatpush.bf16.msra.mxu0 %v1017
      %1029 = vmatpush.bf16.msra.mxu0 %v1016
      %1030 = vmatpush.bf16.msra.mxu0 %v1015
      %1031 = vmatpush.bf16.msra.mxu0 %v1014
      %1032 = vmatpush.bf16.msra.mxu0 %v1013
      %1033 = vmatpush.bf16.msra.mxu0 %v1012
      %1034 = vmatpush.bf16.msra.mxu0 %v1011
      %1035 = vmatmul.bf16.gmra.mxu0 %v976
      %v1036 = vpop.f32.mrf.mxu0
      %v1037 = vadd.f32 %v978, %v1036
      %v1038 = vpop.f32.mrf.mxu0
      %1039 = vdwg.mxu0
      %v1040 = vadd.f32 %v1037, %v915
      %v1041 = vld [vmem:[%s4 + $0x13] sm:$0x1]
      %v1042 = vld [vmem:[%s4 + $0x14] sm:$0x1]
      %v1043 = vsel %vm421, %v1040, 0.0
      %1044 = vadd.xlane.f32.xlu0 %v1043
      %v1045 = vpop.xlane.xlu0 %1044
      %v1046 = vmul.f32 %v1045, %v431
      %v1047 = vsub.f32 %v1040, %v1046
      %v1048 = vmul.f32 %v1047, %v1047
      %v1049 = vsel %vm421, %v1048, 0.0
      %1050 = vadd.xlane.f32.xlu0 %v1049
      %v1051 = vpop.xlane.xlu0 %1050
      %v1052 = vmul.f32 %v1051, %v431
      %v1053 = vadd.f32 %v1052, 1e-12
      %v1054 = vrsqrt.pop %v1053
      %v1055 = vmul.f32 %v1054, %v1053
      %v1056 = vmul.f32 %v1055, %v1054
      %v1057 = vmul.f32 0.5, %v1056
      %v1058 = vsub.f32 1.5, %v1057
      %v1059 = vmul.f32 %v1054, %v1058
      %vm1060 = vweird.f32 %v1053
      %vm1061 = vweird.f32 %v1054
      %vm1062 = vmor %vm1060, %vm1061
      %v1063 = vsel %vm1062, %v1054, %v1059
      %v1064 = vmul.f32 %v1047, %v1063
      %v1065 = vperm.slane %v1041, 0
      %v1066 = vmul.f32 %v1064, %v1065
      %v1067 = vperm.slane %v1042, 0
      %v1068 = vadd.f32 %v1066, %v1067
      %s1069 = scalar_lea.vmem %s6, 112
      %v1070 = vld [vmem:[%s1069] sm:$0xf]
      %v1071 = vld [vmem:[%s1069 + $0x4] sm:$0xf]
      %v1072 = vld [vmem:[%s1069 + $0x8] sm:$0xf]
      %v1073 = vld [vmem:[%s1069 + $0xc] sm:$0xf]
      %v1074 = vpack.c.bf16 %v1068, %v1068
      %v1075 = vld [vmem:[%s4 + $0x15] sm:$0x1]
      %v1076 = vperm.slane %v1075, 0
      %v1081 = vunpack.c.l.b16 %v1070
      %v1082 = vunpack.c.l.b16 %v1071
      %v1083 = vunpack.c.l.b16 %v1072
      %v1084 = vunpack.c.l.b16 %v1073
      %v1085 = vpack.c.b16 %v1082, %v1081
      %v1086 = vpack.c.b16 %v1084, %v1083
      %v1090 = vsel %vm421, %v1074, 0
      %1092 = vmatpush.bf16.msra.mxu0 0
      %1093 = vmatpush.bf16.msra.mxu0 0
      %1094 = vmatpush.bf16.msra.mxu0 0
      %1095 = vmatpush.bf16.msra.mxu0 0
      %1096 = vmatpush.bf16.msra.mxu0 0
      %1097 = vmatpush.bf16.msra.mxu0 0
      %1098 = vmatpush.bf16.msra.mxu0 %v1086
      %1099 = vmatpush.bf16.msra.mxu0 %v1085
      %1100 = vmatmul.bf16.gmra.mxu0 %v1090
      %v1101 = vpop.f32.mrf.mxu0
      %v1102 = vadd.f32 %v1076, %v1101
      %v1103 = vpop.f32.mrf.mxu0
      %1104 = vdwg.mxu0
      %v1105 = vmul.f32 %v1102, 0.35355338
      %1107 = vrot.lane.b32.xlu0 %v1102, 96
      %v1108 = vpop.permute.xlu0 %1107
      %v1110 = vsel %vm525, %v1105, 0
      %v1112 = vsel %vm525, %v1108, 0
      %1114 = vmatpush.xpose.msra.mxu0 0.0
      %1115 = vmatpush.xpose.msra.mxu0 0.0
      %1116 = vmatpush.xpose.msra.mxu0 0.0
      %1117 = vmatpush.xpose.msra.mxu0 0.0
      %1118 = vmatpush.xpose.msra.mxu0 0.0
      %1119 = vmatpush.xpose.msra.mxu0 0.0
      %1120 = vmatpush.xpose.msra.mxu0 0.0
      %1121 = vmatpush.xpose.msra.mxu0 0.0
      %1122 = vmatpush.xpose.msra.mxu0 0.0
      %1123 = vmatpush.xpose.msra.mxu0 0.0
      %1124 = vmatpush.xpose.msra.mxu0 0.0
      %1125 = vmatpush.xpose.msra.mxu0 0.0
      %1126 = vmatpush.xpose.msra.mxu0 0.0
      %1127 = vmatpush.xpose.msra.mxu0 0.0
      %1128 = vmatpush.xpose.msra.mxu0 0.0
      %1129 = vmatpush.xpose.msra.mxu0 %v1112
      %1130 = vmatmul.f32.gmra.mxu0 %v1110
      %v1131 = vpop.f32.mrf.mxu0
      %v1132 = vadd.f32 %v485, %v1131
      %1133 = vdwg.mxu0
      %v1134 = vsel %vm525, %v1132, -inf
      %1135 = vmax.xlane.f32.xlu0 %v1134
      %v1136 = vpop.xlane.xlu0 %1135
      %v1137 = vsub.f32 %v1132, %v1136
      %v1138 = vmul.f32 %v1137, 1.442695
      %v1139 = vpow.pop %v1138
      %v1140 = vsel %vm525, %v1139, 0.0
      %1141 = vadd.xlane.f32.xlu0 %v1140
      %v1142 = vpop.xlane.xlu0 %1141
      %v1143 = vrcp.pop %v1142
      %v1144 = vmul.f32 %v1142, %v1143
      %v1145 = vsub.f32 1.0, %v1144
      %v1146 = vmul.f32 %v1143, %v1145
      %v1147 = vadd.f32 %v1143, %v1146
      %vm1148 = vweird.f32 %v1142
      %vm1149 = vweird.f32 %v1143
      %vm1150 = vmor %vm1148, %vm1149
      %v1151 = vsel %vm1150, %v1143, %v1147
      %v1152 = vand.u32 2147483647, %v1142
      %vm1153 = vcmp.eq.f32.partialorder %v1152, 8.507059e+37
      %v1154 = vand.u32 %v1142, 2147483648
      %v1155 = vor.u32 1.1754944e-38, %v1154
      %v1156 = vsel %vm1153, %v1155, %v1151
      %v1157 = vmul.f32 %v1139, %v1156
      %1158 = vrot.lane.b32.xlu0 %v1102, 64
      %v1159 = vpop.permute.xlu0 %1158
      %v1162 = vsel %vm525, %v1157, 0
      %1164 = vmatpush.msra.mxu0 0.0
      %1165 = vmatpush.msra.mxu0 0.0
      %1166 = vmatpush.msra.mxu0 0.0
      %1167 = vmatpush.msra.mxu0 0.0
      %1168 = vmatpush.msra.mxu0 0.0
      %1169 = vmatpush.msra.mxu0 0.0
      %1170 = vmatpush.msra.mxu0 0.0
      %1171 = vmatpush.msra.mxu0 0.0
      %1172 = vmatpush.msra.mxu0 0.0
      %1173 = vmatpush.msra.mxu0 0.0
      %1174 = vmatpush.msra.mxu0 0.0
      %1175 = vmatpush.msra.mxu0 0.0
      %1176 = vmatpush.msra.mxu0 0.0
      %1177 = vmatpush.msra.mxu0 0.0
      %1178 = vmatpush.msra.mxu0 0.0
      %1179 = vmatpush.msra.mxu0 %v1159
      %1180 = vmatmul.f32.gmra.mxu0 %v1162
      %v1181 = vpop.f32.mrf.mxu0
      %v1182 = vadd.f32 0.0, %v1181
      %1183 = vdwg.mxu0
      %1184 = vrot.lane.b32.xlu0 %v1105, 120
      %v1185 = vpop.permute.xlu0 %1184
      %1186 = vrot.lane.b32.xlu0 %v1102, 88
      %v1187 = vpop.permute.xlu0 %1186
      %v1188 = vsel %vm525, %v1185, 0
      %v1190 = vsel %vm525, %v1187, 0
      %1192 = vmatpush.xpose.msra.mxu0 0.0
      %1193 = vmatpush.xpose.msra.mxu0 0.0
      %1194 = vmatpush.xpose.msra.mxu0 0.0
      %1195 = vmatpush.xpose.msra.mxu0 0.0
      %1196 = vmatpush.xpose.msra.mxu0 0.0
      %1197 = vmatpush.xpose.msra.mxu0 0.0
      %1198 = vmatpush.xpose.msra.mxu0 0.0
      %1199 = vmatpush.xpose.msra.mxu0 0.0
      %1200 = vmatpush.xpose.msra.mxu0 0.0
      %1201 = vmatpush.xpose.msra.mxu0 0.0
      %1202 = vmatpush.xpose.msra.mxu0 0.0
      %1203 = vmatpush.xpose.msra.mxu0 0.0
      %1204 = vmatpush.xpose.msra.mxu0 0.0
      %1205 = vmatpush.xpose.msra.mxu0 0.0
      %1206 = vmatpush.xpose.msra.mxu0 0.0
      %1207 = vmatpush.xpose.msra.mxu0 %v1190
      %1208 = vmatmul.f32.gmra.mxu0 %v1188
      %v1209 = vpop.f32.mrf.mxu0
      %v1210 = vadd.f32 %v485, %v1209
      %1211 = vdwg.mxu0
      %v1212 = vsel %vm525, %v1210, -inf
      %1213 = vmax.xlane.f32.xlu0 %v1212
      %v1214 = vpop.xlane.xlu0 %1213
      %v1215 = vsub.f32 %v1210, %v1214
      %v1216 = vmul.f32 %v1215, 1.442695
      %v1217 = vpow.pop %v1216
      %v1218 = vsel %vm525, %v1217, 0.0
      %1219 = vadd.xlane.f32.xlu0 %v1218
      %v1220 = vpop.xlane.xlu0 %1219
      %v1221 = vrcp.pop %v1220
      %v1222 = vmul.f32 %v1220, %v1221
      %v1223 = vsub.f32 1.0, %v1222
      %v1224 = vmul.f32 %v1221, %v1223
      %v1225 = vadd.f32 %v1221, %v1224
      %vm1226 = vweird.f32 %v1220
      %vm1227 = vweird.f32 %v1221
      %vm1228 = vmor %vm1226, %vm1227
      %v1229 = vsel %vm1228, %v1221, %v1225
      %v1230 = vand.u32 2147483647, %v1220
      %vm1231 = vcmp.eq.f32.partialorder %v1230, 8.507059e+37
      %v1232 = vand.u32 %v1220, 2147483648
      %v1233 = vor.u32 1.1754944e-38, %v1232
      %v1234 = vsel %vm1231, %v1233, %v1229
      %v1235 = vmul.f32 %v1217, %v1234
      %1236 = vrot.lane.b32.xlu0 %v1102, 56
      %v1237 = vpop.permute.xlu0 %1236
      %v1240 = vsel %vm525, %v1235, 0
      %1242 = vmatpush.msra.mxu0 0.0
      %1243 = vmatpush.msra.mxu0 0.0
      %1244 = vmatpush.msra.mxu0 0.0
      %1245 = vmatpush.msra.mxu0 0.0
      %1246 = vmatpush.msra.mxu0 0.0
      %1247 = vmatpush.msra.mxu0 0.0
      %1248 = vmatpush.msra.mxu0 0.0
      %1249 = vmatpush.msra.mxu0 0.0
      %1250 = vmatpush.msra.mxu0 0.0
      %1251 = vmatpush.msra.mxu0 0.0
      %1252 = vmatpush.msra.mxu0 0.0
      %1253 = vmatpush.msra.mxu0 0.0
      %1254 = vmatpush.msra.mxu0 0.0
      %1255 = vmatpush.msra.mxu0 0.0
      %1256 = vmatpush.msra.mxu0 0.0
      %1257 = vmatpush.msra.mxu0 %v1237
      %1258 = vmatmul.f32.gmra.mxu0 %v1240
      %v1259 = vpop.f32.mrf.mxu0
      %v1260 = vadd.f32 0.0, %v1259
      %1261 = vdwg.mxu0
      %1262 = vrot.lane.b32.xlu0 %v1105, 112
      %v1263 = vpop.permute.xlu0 %1262
      %1264 = vrot.lane.b32.xlu0 %v1102, 80
      %v1265 = vpop.permute.xlu0 %1264
      %v1266 = vsel %vm525, %v1263, 0
      %v1268 = vsel %vm525, %v1265, 0
      %1270 = vmatpush.xpose.msra.mxu0 0.0
      %1271 = vmatpush.xpose.msra.mxu0 0.0
      %1272 = vmatpush.xpose.msra.mxu0 0.0
      %1273 = vmatpush.xpose.msra.mxu0 0.0
      %1274 = vmatpush.xpose.msra.mxu0 0.0
      %1275 = vmatpush.xpose.msra.mxu0 0.0
      %1276 = vmatpush.xpose.msra.mxu0 0.0
      %1277 = vmatpush.xpose.msra.mxu0 0.0
      %1278 = vmatpush.xpose.msra.mxu0 0.0
      %1279 = vmatpush.xpose.msra.mxu0 0.0
      %1280 = vmatpush.xpose.msra.mxu0 0.0
      %1281 = vmatpush.xpose.msra.mxu0 0.0
      %1282 = vmatpush.xpose.msra.mxu0 0.0
      %1283 = vmatpush.xpose.msra.mxu0 0.0
      %1284 = vmatpush.xpose.msra.mxu0 0.0
      %1285 = vmatpush.xpose.msra.mxu0 %v1268
      %1286 = vmatmul.f32.gmra.mxu0 %v1266
      %v1287 = vpop.f32.mrf.mxu0
      %v1288 = vadd.f32 %v485, %v1287
      %1289 = vdwg.mxu0
      %v1290 = vsel %vm525, %v1288, -inf
      %1291 = vmax.xlane.f32.xlu0 %v1290
      %v1292 = vpop.xlane.xlu0 %1291
      %v1293 = vsub.f32 %v1288, %v1292
      %v1294 = vmul.f32 %v1293, 1.442695
      %v1295 = vpow.pop %v1294
      %v1296 = vsel %vm525, %v1295, 0.0
      %1297 = vadd.xlane.f32.xlu0 %v1296
      %v1298 = vpop.xlane.xlu0 %1297
      %v1299 = vrcp.pop %v1298
      %v1300 = vmul.f32 %v1298, %v1299
      %v1301 = vsub.f32 1.0, %v1300
      %v1302 = vmul.f32 %v1299, %v1301
      %v1303 = vadd.f32 %v1299, %v1302
      %vm1304 = vweird.f32 %v1298
      %vm1305 = vweird.f32 %v1299
      %vm1306 = vmor %vm1304, %vm1305
      %v1307 = vsel %vm1306, %v1299, %v1303
      %v1308 = vand.u32 2147483647, %v1298
      %vm1309 = vcmp.eq.f32.partialorder %v1308, 8.507059e+37
      %v1310 = vand.u32 %v1298, 2147483648
      %v1311 = vor.u32 1.1754944e-38, %v1310
      %v1312 = vsel %vm1309, %v1311, %v1307
      %v1313 = vmul.f32 %v1295, %v1312
      %1314 = vrot.lane.b32.xlu0 %v1102, 48
      %v1315 = vpop.permute.xlu0 %1314
      %v1318 = vsel %vm525, %v1313, 0
      %1320 = vmatpush.msra.mxu0 0.0
      %1321 = vmatpush.msra.mxu0 0.0
      %1322 = vmatpush.msra.mxu0 0.0
      %1323 = vmatpush.msra.mxu0 0.0
      %1324 = vmatpush.msra.mxu0 0.0
      %1325 = vmatpush.msra.mxu0 0.0
      %1326 = vmatpush.msra.mxu0 0.0
      %1327 = vmatpush.msra.mxu0 0.0
      %1328 = vmatpush.msra.mxu0 0.0
      %1329 = vmatpush.msra.mxu0 0.0
      %1330 = vmatpush.msra.mxu0 0.0
      %1331 = vmatpush.msra.mxu0 0.0
      %1332 = vmatpush.msra.mxu0 0.0
      %1333 = vmatpush.msra.mxu0 0.0
      %1334 = vmatpush.msra.mxu0 0.0
      %1335 = vmatpush.msra.mxu0 %v1315
      %1336 = vmatmul.f32.gmra.mxu0 %v1318
      %v1337 = vpop.f32.mrf.mxu0
      %v1338 = vadd.f32 0.0, %v1337
      %1339 = vdwg.mxu0
      %1340 = vrot.lane.b32.xlu0 %v1105, 104
      %v1341 = vpop.permute.xlu0 %1340
      %1342 = vrot.lane.b32.xlu0 %v1102, 72
      %v1343 = vpop.permute.xlu0 %1342
      %v1344 = vsel %vm525, %v1341, 0
      %v1346 = vsel %vm525, %v1343, 0
      %1348 = vmatpush.xpose.msra.mxu0 0.0
      %1349 = vmatpush.xpose.msra.mxu0 0.0
      %1350 = vmatpush.xpose.msra.mxu0 0.0
      %1351 = vmatpush.xpose.msra.mxu0 0.0
      %1352 = vmatpush.xpose.msra.mxu0 0.0
      %1353 = vmatpush.xpose.msra.mxu0 0.0
      %1354 = vmatpush.xpose.msra.mxu0 0.0
      %1355 = vmatpush.xpose.msra.mxu0 0.0
      %1356 = vmatpush.xpose.msra.mxu0 0.0
      %1357 = vmatpush.xpose.msra.mxu0 0.0
      %1358 = vmatpush.xpose.msra.mxu0 0.0
      %1359 = vmatpush.xpose.msra.mxu0 0.0
      %1360 = vmatpush.xpose.msra.mxu0 0.0
      %1361 = vmatpush.xpose.msra.mxu0 0.0
      %1362 = vmatpush.xpose.msra.mxu0 0.0
      %1363 = vmatpush.xpose.msra.mxu0 %v1346
      %1364 = vmatmul.f32.gmra.mxu0 %v1344
      %v1365 = vpop.f32.mrf.mxu0
      %v1366 = vadd.f32 %v485, %v1365
      %1367 = vdwg.mxu0
      %v1368 = vsel %vm525, %v1366, -inf
      %1369 = vmax.xlane.f32.xlu0 %v1368
      %v1370 = vpop.xlane.xlu0 %1369
      %v1371 = vsub.f32 %v1366, %v1370
      %v1372 = vmul.f32 %v1371, 1.442695
      %v1373 = vpow.pop %v1372
      %v1374 = vsel %vm525, %v1373, 0.0
      %1375 = vadd.xlane.f32.xlu0 %v1374
      %v1376 = vpop.xlane.xlu0 %1375
      %v1377 = vrcp.pop %v1376
      %v1378 = vmul.f32 %v1376, %v1377
      %v1379 = vsub.f32 1.0, %v1378
      %v1380 = vmul.f32 %v1377, %v1379
      %v1381 = vadd.f32 %v1377, %v1380
      %vm1382 = vweird.f32 %v1376
      %vm1383 = vweird.f32 %v1377
      %vm1384 = vmor %vm1382, %vm1383
      %v1385 = vsel %vm1384, %v1377, %v1381
      %v1386 = vand.u32 2147483647, %v1376
      %vm1387 = vcmp.eq.f32.partialorder %v1386, 8.507059e+37
      %v1388 = vand.u32 %v1376, 2147483648
      %v1389 = vor.u32 1.1754944e-38, %v1388
      %v1390 = vsel %vm1387, %v1389, %v1385
      %v1391 = vmul.f32 %v1373, %v1390
      %1392 = vrot.lane.b32.xlu0 %v1102, 40
      %v1393 = vpop.permute.xlu0 %1392
      %v1396 = vsel %vm525, %v1391, 0
      %1398 = vmatpush.msra.mxu0 0.0
      %1399 = vmatpush.msra.mxu0 0.0
      %1400 = vmatpush.msra.mxu0 0.0
      %1401 = vmatpush.msra.mxu0 0.0
      %1402 = vmatpush.msra.mxu0 0.0
      %1403 = vmatpush.msra.mxu0 0.0
      %1404 = vmatpush.msra.mxu0 0.0
      %1405 = vmatpush.msra.mxu0 0.0
      %1406 = vmatpush.msra.mxu0 0.0
      %1407 = vmatpush.msra.mxu0 0.0
      %1408 = vmatpush.msra.mxu0 0.0
      %1409 = vmatpush.msra.mxu0 0.0
      %1410 = vmatpush.msra.mxu0 0.0
      %1411 = vmatpush.msra.mxu0 0.0
      %1412 = vmatpush.msra.mxu0 0.0
      %1413 = vmatpush.msra.mxu0 %v1393
      %1414 = vmatmul.f32.gmra.mxu0 %v1396
      %v1415 = vpop.f32.mrf.mxu0
      %v1416 = vadd.f32 0.0, %v1415
      %1417 = vdwg.mxu0
      %1419 = vrot.lane.b32.xlu0 %v1260, 8
      %v1420 = vpop.permute.xlu0 %1419
      %1423 = vrot.lane.b32.xlu0 %v1338, 16
      %v1424 = vpop.permute.xlu0 %1423
      %1427 = vrot.lane.b32.xlu0 %v1416, 24
      %v1428 = vpop.permute.xlu0 %1427
      %v1430 = vsel %vm525, %v1182, %v1420
      %v1431 = vsel %vm848, %v1430, %v1424
      %v1432 = vsel %vm850, %v1431, %v1428
      %v1433 = vld [vmem:[%s1069 + $0x10] sm:$0xf]
      %v1434 = vld [vmem:[%s1069 + $0x14] sm:$0xf]
      %v1435 = vld [vmem:[%s1069 + $0x18] sm:$0xf]
      %v1436 = vld [vmem:[%s1069 + $0x1c] sm:$0xf]
      %v1437 = vpack.c.bf16 %v1432, %v1432
      %v1438 = vld [vmem:[%s4 + $0x16] sm:$0x1]
      %v1439 = vperm.slane %v1438, 0
      %v1444 = vunpack.c.l.b16 %v1433
      %v1445 = vunpack.c.l.b16 %v1434
      %v1446 = vunpack.c.l.b16 %v1435
      %v1447 = vunpack.c.l.b16 %v1436
      %v1448 = vpack.c.b16 %v1445, %v1444
      %v1449 = vpack.c.b16 %v1447, %v1446
      %v1453 = vsel %vm421, %v1437, 0
      %1455 = vmatpush.bf16.msra.mxu0 0
      %1456 = vmatpush.bf16.msra.mxu0 0
      %1457 = vmatpush.bf16.msra.mxu0 0
      %1458 = vmatpush.bf16.msra.mxu0 0
      %1459 = vmatpush.bf16.msra.mxu0 0
      %1460 = vmatpush.bf16.msra.mxu0 0
      %1461 = vmatpush.bf16.msra.mxu0 %v1449
      %1462 = vmatpush.bf16.msra.mxu0 %v1448
      %1463 = vmatmul.bf16.gmra.mxu0 %v1453
      %v1464 = vpop.f32.mrf.mxu0
      %v1465 = vadd.f32 %v1439, %v1464
      %v1466 = vpop.f32.mrf.mxu0
      %1467 = vdwg.mxu0
      %v1468 = vadd.f32 %v1465, %v1068
      %v1469 = vld [vmem:[%s4 + $0x17] sm:$0x1]
      %v1470 = vld [vmem:[%s4 + $0x18] sm:$0x1]
      %v1471 = vsel %vm421, %v1468, 0.0
      %1472 = vadd.xlane.f32.xlu0 %v1471
      %v1473 = vpop.xlane.xlu0 %1472
      %v1474 = vmul.f32 %v1473, %v431
      %v1475 = vsub.f32 %v1468, %v1474
      %v1476 = vmul.f32 %v1475, %v1475
      %v1477 = vsel %vm421, %v1476, 0.0
      %1478 = vadd.xlane.f32.xlu0 %v1477
      %v1479 = vpop.xlane.xlu0 %1478
      %v1480 = vmul.f32 %v1479, %v431
      %v1481 = vadd.f32 %v1480, 1e-12
      %v1482 = vrsqrt.pop %v1481
      %v1483 = vmul.f32 %v1482, %v1481
      %v1484 = vmul.f32 %v1483, %v1482
      %v1485 = vmul.f32 0.5, %v1484
      %v1486 = vsub.f32 1.5, %v1485
      %v1487 = vmul.f32 %v1482, %v1486
      %vm1488 = vweird.f32 %v1481
      %vm1489 = vweird.f32 %v1482
      %vm1490 = vmor %vm1488, %vm1489
      %v1491 = vsel %vm1490, %v1482, %v1487
      %v1492 = vmul.f32 %v1475, %v1491
      %v1493 = vperm.slane %v1469, 0
      %v1494 = vmul.f32 %v1492, %v1493
      %v1495 = vperm.slane %v1470, 0
      %v1496 = vadd.f32 %v1494, %v1495
      %v1497 = vld [vmem:[%s1069 + $0x20] sm:$0xf]
      %v1498 = vld [vmem:[%s1069 + $0x24] sm:$0xf]
      %v1499 = vld [vmem:[%s1069 + $0x28] sm:$0xf]
      %v1500 = vld [vmem:[%s1069 + $0x2c] sm:$0xf]
      %v1501 = vpack.c.bf16 %v1496, %v1496
      %v1502 = vld [vmem:[%s4 + $0x19] sm:$0x1]
      %v1503 = vperm.slane %v1502, 0
      %v1508 = vunpack.c.l.b16 %v1497
      %v1509 = vunpack.c.l.b16 %v1498
      %v1510 = vunpack.c.l.b16 %v1499
      %v1511 = vunpack.c.l.b16 %v1500
      %v1512 = vpack.c.b16 %v1509, %v1508
      %v1513 = vpack.c.b16 %v1511, %v1510
      %v1517 = vsel %vm421, %v1501, 0
      %1519 = vmatpush.bf16.msra.mxu0 0
      %1520 = vmatpush.bf16.msra.mxu0 0
      %1521 = vmatpush.bf16.msra.mxu0 0
      %1522 = vmatpush.bf16.msra.mxu0 0
      %1523 = vmatpush.bf16.msra.mxu0 0
      %1524 = vmatpush.bf16.msra.mxu0 0
      %1525 = vmatpush.bf16.msra.mxu0 %v1513
      %1526 = vmatpush.bf16.msra.mxu0 %v1512
      %1527 = vmatmul.bf16.gmra.mxu0 %v1517
      %v1528 = vpop.f32.mrf.mxu0
      %v1529 = vadd.f32 %v1503, %v1528
      %v1530 = vpop.f32.mrf.mxu0
      %1531 = vdwg.mxu0
      %v1532 = vmul.f32 %v1529, %v1529
      %v1533 = vmul.f32 %v1529, %v1532
      %v1534 = vmul.f32 %v1533, 0.044715
      %v1535 = vadd.f32 %v1529, %v1534
      %v1536 = vmul.f32 %v1535, 0.7978846
      %v1537 = vtanh.pop %v1536
      %v1538 = vadd.f32 %v1537, 1.0
      %v1539 = vmul.f32 %v1538, 0.5
      %v1540 = vmul.f32 %v1529, %v1539
      %v1541 = vld [vmem:[%s1069 + $0x30] sm:$0xf]
      %v1542 = vld [vmem:[%s1069 + $0x34] sm:$0xf]
      %v1543 = vld [vmem:[%s1069 + $0x38] sm:$0xf]
      %v1544 = vld [vmem:[%s1069 + $0x3c] sm:$0xf]
      %v1545 = vld [vmem:[%s1069 + $0x40] sm:$0xf]
      %v1546 = vld [vmem:[%s1069 + $0x44] sm:$0xf]
      %v1547 = vld [vmem:[%s1069 + $0x48] sm:$0xf]
      %v1548 = vld [vmem:[%s1069 + $0x4c] sm:$0xf]
      %v1549 = vld [vmem:[%s1069 + $0x50] sm:$0xf]
      %v1550 = vld [vmem:[%s1069 + $0x54] sm:$0xf]
      %v1551 = vld [vmem:[%s1069 + $0x58] sm:$0xf]
      %v1552 = vld [vmem:[%s1069 + $0x5c] sm:$0xf]
      %v1553 = vld [vmem:[%s1069 + $0x60] sm:$0xf]
      %v1554 = vld [vmem:[%s1069 + $0x64] sm:$0xf]
      %v1555 = vld [vmem:[%s1069 + $0x68] sm:$0xf]
      %v1556 = vld [vmem:[%s1069 + $0x6c] sm:$0xf]
      %v1557 = vpack.c.bf16 %v1540, %v1540
      %v1558 = vld [vmem:[%s4 + $0x1a] sm:$0x1]
      %v1559 = vperm.slane %v1558, 0
      %v1576 = vunpack.c.l.b16 %v1541
      %v1577 = vunpack.c.l.b16 %v1542
      %v1578 = vunpack.c.l.b16 %v1543
      %v1579 = vunpack.c.l.b16 %v1544
      %v1580 = vunpack.c.l.b16 %v1545
      %v1581 = vunpack.c.l.b16 %v1546
      %v1582 = vunpack.c.l.b16 %v1547
      %v1583 = vunpack.c.l.b16 %v1548
      %v1584 = vunpack.c.l.b16 %v1549
      %v1585 = vunpack.c.l.b16 %v1550
      %v1586 = vunpack.c.l.b16 %v1551
      %v1587 = vunpack.c.l.b16 %v1552
      %v1588 = vunpack.c.l.b16 %v1553
      %v1589 = vunpack.c.l.b16 %v1554
      %v1590 = vunpack.c.l.b16 %v1555
      %v1591 = vunpack.c.l.b16 %v1556
      %v1592 = vpack.c.b16 %v1577, %v1576
      %v1593 = vpack.c.b16 %v1579, %v1578
      %v1594 = vpack.c.b16 %v1581, %v1580
      %v1595 = vpack.c.b16 %v1583, %v1582
      %v1596 = vpack.c.b16 %v1585, %v1584
      %v1597 = vpack.c.b16 %v1587, %v1586
      %v1598 = vpack.c.b16 %v1589, %v1588
      %v1599 = vpack.c.b16 %v1591, %v1590
      %1608 = vmatpush.bf16.msra.mxu0 %v1599
      %1609 = vmatpush.bf16.msra.mxu0 %v1598
      %1610 = vmatpush.bf16.msra.mxu0 %v1597
      %1611 = vmatpush.bf16.msra.mxu0 %v1596
      %1612 = vmatpush.bf16.msra.mxu0 %v1595
      %1613 = vmatpush.bf16.msra.mxu0 %v1594
      %1614 = vmatpush.bf16.msra.mxu0 %v1593
      %1615 = vmatpush.bf16.msra.mxu0 %v1592
      %1616 = vmatmul.bf16.gmra.mxu0 %v1557
      %v1617 = vpop.f32.mrf.mxu0
      %v1618 = vadd.f32 %v1559, %v1617
      %v1619 = vpop.f32.mrf.mxu0
      %1620 = vdwg.mxu0
      %v1621 = vadd.f32 %v1618, %v1496
      %v1622 = vld [vmem:[%s4 + $0x1b] sm:$0x1]
      %v1623 = vld [vmem:[%s4 + $0x1c] sm:$0x1]
      %v1624 = vsel %vm421, %v1621, 0.0
      %1625 = vadd.xlane.f32.xlu0 %v1624
      %v1626 = vpop.xlane.xlu0 %1625
      %v1627 = vmul.f32 %v1626, %v431
      %v1628 = vsub.f32 %v1621, %v1627
      %v1629 = vmul.f32 %v1628, %v1628
      %v1630 = vsel %vm421, %v1629, 0.0
      %1631 = vadd.xlane.f32.xlu0 %v1630
      %v1632 = vpop.xlane.xlu0 %1631
      %v1633 = vmul.f32 %v1632, %v431
      %v1634 = vadd.f32 %v1633, 1e-12
      %v1635 = vrsqrt.pop %v1634
      %v1636 = vmul.f32 %v1635, %v1634
      %v1637 = vmul.f32 %v1636, %v1635
      %v1638 = vmul.f32 0.5, %v1637
      %v1639 = vsub.f32 1.5, %v1638
      %v1640 = vmul.f32 %v1635, %v1639
      %vm1641 = vweird.f32 %v1634
      %vm1642 = vweird.f32 %v1635
      %vm1643 = vmor %vm1641, %vm1642
      %v1644 = vsel %vm1643, %v1635, %v1640
      %v1645 = vmul.f32 %v1628, %v1644
      %v1646 = vperm.slane %v1622, 0
      %v1647 = vmul.f32 %v1645, %v1646
      %v1648 = vperm.slane %v1623, 0
      %v1649 = vadd.f32 %v1647, %v1648
      %v1650 = vld [vmem:[%s5 + $0x20] sm:$0xf]
      %v1651 = vld [vmem:[%s5 + $0x24] sm:$0xf]
      %v1652 = vld [vmem:[%s5 + $0x28] sm:$0xf]
      %v1653 = vld [vmem:[%s5 + $0x2c] sm:$0xf]
      %v1654 = vpack.c.bf16 %v1649, %v1649
      %v1655 = vld [vmem:[%s4 + $0x5] sm:$0x1]
      %v1656 = vperm.slane %v1655, 0
      %v1661 = vunpack.c.l.b16 %v1650
      %v1662 = vunpack.c.l.b16 %v1651
      %v1663 = vunpack.c.l.b16 %v1652
      %v1664 = vunpack.c.l.b16 %v1653
      %v1665 = vpack.c.b16 %v1662, %v1661
      %v1666 = vpack.c.b16 %v1664, %v1663
      %v1670 = vsel %vm421, %v1654, 0
      %1672 = vmatpush.bf16.msra.mxu0 0
      %1673 = vmatpush.bf16.msra.mxu0 0
      %1674 = vmatpush.bf16.msra.mxu0 0
      %1675 = vmatpush.bf16.msra.mxu0 0
      %1676 = vmatpush.bf16.msra.mxu0 0
      %1677 = vmatpush.bf16.msra.mxu0 0
      %1678 = vmatpush.bf16.msra.mxu0 %v1666
      %1679 = vmatpush.bf16.msra.mxu0 %v1665
      %1680 = vmatmul.bf16.gmra.mxu0 %v1670
      %v1681 = vpop.f32.mrf.mxu0
      %v1682 = vadd.f32 %v1656, %v1681
      %v1683 = vpop.f32.mrf.mxu0
      %1684 = vdwg.mxu0
      %v1685 = vld [vmem:[%s4 + $0x6] sm:$0x1]
      %v1686 = vld [vmem:[%s4 + $0x7] sm:$0x1]
      %v1687 = vsel %vm421, %v1682, 0.0
      %1688 = vadd.xlane.f32.xlu0 %v1687
      %v1689 = vpop.xlane.xlu0 %1688
      %v1690 = vmul.f32 %v1689, %v431
      %v1691 = vsub.f32 %v1682, %v1690
      %v1692 = vmul.f32 %v1691, %v1691
      %v1693 = vsel %vm421, %v1692, 0.0
      %1694 = vadd.xlane.f32.xlu0 %v1693
      %v1695 = vpop.xlane.xlu0 %1694
      %v1696 = vmul.f32 %v1695, %v431
      %v1697 = vadd.f32 %v1696, 1e-05
      %v1698 = vrsqrt.pop %v1697
      %v1699 = vmul.f32 %v1698, %v1697
      %v1700 = vmul.f32 %v1699, %v1698
      %v1701 = vmul.f32 0.5, %v1700
      %v1702 = vsub.f32 1.5, %v1701
      %v1703 = vmul.f32 %v1698, %v1702
      %vm1704 = vweird.f32 %v1697
      %vm1705 = vweird.f32 %v1698
      %vm1706 = vmor %vm1704, %vm1705
      %v1707 = vsel %vm1706, %v1698, %v1703
      %v1708 = vmul.f32 %v1691, %v1707
      %v1709 = vperm.slane %v1685, 0
      %v1710 = vmul.f32 %v1708, %v1709
      %v1711 = vperm.slane %v1686, 0
      %v1712 = vadd.f32 %v1710, %v1711
      %v1713 = vmax.f32 %v1712, 0.0
      %v1714 = vld [vmem:[%s5 + $0x30] sm:$0xf]
      %v1715 = vld [vmem:[%s5 + $0x34] sm:$0xf]
      %v1716 = vld [vmem:[%s5 + $0x38] sm:$0xf]
      %v1717 = vld [vmem:[%s5 + $0x3c] sm:$0xf]
      %v1718 = vpack.c.bf16 %v1713, %v1713
      %v1719 = vld [vmem:[%s4 + $0x8] sm:$0x1]
      %v1720 = vperm.slane %v1719, 0
      %v1725 = vunpack.c.l.b16 %v1714
      %v1726 = vunpack.c.l.b16 %v1715
      %v1727 = vunpack.c.l.b16 %v1716
      %v1728 = vunpack.c.l.b16 %v1717
      %v1729 = vpack.c.b16 %v1726, %v1725
      %v1730 = vpack.c.b16 %v1728, %v1727
      %v1734 = vsel %vm421, %v1718, 0
      %1736 = vmatpush.bf16.msra.mxu0 0
      %1737 = vmatpush.bf16.msra.mxu0 0
      %1738 = vmatpush.bf16.msra.mxu0 0
      %1739 = vmatpush.bf16.msra.mxu0 0
      %1740 = vmatpush.bf16.msra.mxu0 0
      %1741 = vmatpush.bf16.msra.mxu0 0
      %1742 = vmatpush.bf16.msra.mxu0 %v1730
      %1743 = vmatpush.bf16.msra.mxu0 %v1729
      %1744 = vmatmul.bf16.gmra.mxu0 %v1734
      %v1745 = vpop.f32.mrf.mxu0
      %v1746 = vadd.f32 %v1720, %v1745
      %v1747 = vpop.f32.mrf.mxu0
      %1748 = vdwg.mxu0
      %1749 = vst [vmem:[%s358] sm:$0xff] %v1746
      %v1750 = vld [vmem:[%s5 + $0x40] sm:$0xf]
      %v1751 = vld [vmem:[%s5 + $0x44] sm:$0xf]
      %v1752 = vld [vmem:[%s5 + $0x48] sm:$0xf]
      %v1753 = vld [vmem:[%s5 + $0x4c] sm:$0xf]
      %v1754 = vld [vmem:[%s4 + $0x9] sm:$0x1]
      %v1755 = vperm.slane %v1754, 0
      %v1760 = vunpack.c.l.b16 %v1750
      %v1761 = vunpack.c.l.b16 %v1751
      %v1762 = vunpack.c.l.b16 %v1752
      %v1763 = vunpack.c.l.b16 %v1753
      %v1764 = vpack.c.b16 %v1761, %v1760
      %v1765 = vpack.c.b16 %v1763, %v1762
      %1768 = vmatpush.bf16.msra.mxu0 0
      %1769 = vmatpush.bf16.msra.mxu0 0
      %1770 = vmatpush.bf16.msra.mxu0 0
      %1771 = vmatpush.bf16.msra.mxu0 0
      %1772 = vmatpush.bf16.msra.mxu0 0
      %1773 = vmatpush.bf16.msra.mxu0 0
      %1774 = vmatpush.bf16.msra.mxu0 %v1765
      %1775 = vmatpush.bf16.msra.mxu0 %v1764
      %1776 = vmatmul.bf16.gmra.mxu0 %v1670
      %v1777 = vpop.f32.mrf.mxu0
      %v1778 = vadd.f32 %v1755, %v1777
      %v1779 = vpop.f32.mrf.mxu0
      %1780 = vdwg.mxu0
      %v1781 = vld [vmem:[%s4 + $0xa] sm:$0x1]
      %v1782 = vld [vmem:[%s4 + $0xb] sm:$0x1]
      %v1783 = vsel %vm848, %v1778, 0.0
      %1784 = vadd.xlane.f32.xlu0 %v1783
      %v1785 = vpop.xlane.xlu0 %1784
      %v1786 = vrcp.pop 16.0
      %v1787 = vmul.f32 16.0, %v1786
      %v1788 = vsub.f32 1.0, %v1787
      %v1789 = vmul.f32 %v1786, %v1788
      %v1790 = vadd.f32 %v1786, %v1789
      %vm1791 = vweird.f32 %v1786
      %v1792 = vsel %vm1791, %v1786, %v1790
      %v1793 = vmul.f32 %v1785, %v1792
      %v1794 = vsub.f32 %v1778, %v1793
      %v1795 = vmul.f32 %v1794, %v1794
      %v1796 = vsel %vm848, %v1795, 0.0
      %1797 = vadd.xlane.f32.xlu0 %v1796
      %v1798 = vpop.xlane.xlu0 %1797
      %v1799 = vmul.f32 %v1798, %v1792
      %v1800 = vadd.f32 %v1799, 1e-05
      %v1801 = vrsqrt.pop %v1800
      %v1802 = vmul.f32 %v1801, %v1800
      %v1803 = vmul.f32 %v1802, %v1801
      %v1804 = vmul.f32 0.5, %v1803
      %v1805 = vsub.f32 1.5, %v1804
      %v1806 = vmul.f32 %v1801, %v1805
      %vm1807 = vweird.f32 %v1800
      %vm1808 = vweird.f32 %v1801
      %vm1809 = vmor %vm1807, %vm1808
      %v1810 = vsel %vm1809, %v1801, %v1806
      %v1811 = vmul.f32 %v1794, %v1810
      %v1812 = vperm.slane %v1781, 0
      %v1813 = vmul.f32 %v1811, %v1812
      %v1814 = vperm.slane %v1782, 0
      %v1815 = vadd.f32 %v1813, %v1814
      %v1816 = vmax.f32 %v1815, 0.0
      %v1817 = vld [vmem:[%s5 + $0x50] sm:$0xf]
      %v1818 = vld [vmem:[%s5 + $0x54] sm:$0xf]
      %v1819 = vpack.c.bf16 %v1816, %v1816
      %v1820 = vld [vmem:[%s4 + $0xc] sm:$0x1]
      %v1821 = vperm.slane %v1820, 0
      %v1824 = vunpack.c.l.b16 %v1817
      %v1825 = vunpack.c.l.b16 %v1818
      %v1826 = vpack.c.b16 %v1825, %v1824
      %v1829 = vsel %vm848, %v1819, 0
      %1831 = vmatpush.bf16.msra.mxu0 0
      %1832 = vmatpush.bf16.msra.mxu0 0
      %1833 = vmatpush.bf16.msra.mxu0 0
      %1834 = vmatpush.bf16.msra.mxu0 0
      %1835 = vmatpush.bf16.msra.mxu0 0
      %1836 = vmatpush.bf16.msra.mxu0 0
      %1837 = vmatpush.bf16.msra.mxu0 0
      %1838 = vmatpush.bf16.msra.mxu0 %v1826
      %1839 = vmatmul.bf16.gmra.mxu0 %v1829
      %v1840 = vpop.f32.mrf.mxu0
      %v1841 = vadd.f32 %v1821, %v1840
      %v1842 = vpop.f32.mrf.mxu0
      %1843 = vdwg.mxu0
      %v1844 = vtanh.pop %v1841
      %1845 = vst [vmem:[%s362] sm:$0xff] %v1844
      %p1846 = scmp.lt.s32.totalorder %s20, 1
      %s1847 = scalar_select %p1846, %s20, 1
      %s1848 = smul.addr %s1847, 8
      %s1849 = scalar_lea.vmem %s7, %s1848
      %p1850 = scmp.lt.s32.totalorder %s20, 1
      %s1851 = scalar_select %p1850, %s20, 1
      %s1852 = smul.addr %s1851, 8
      %s1853 = scalar_lea.vmem %s8, %s1852
      // Predicated region
      $region49: #{forward.1} parent=47 // pred_check
        %p1854 = pneg %p205
      $region50: #{forward.1} parent=47 // pred_check_branch
        %1856 = sbr.rel (%p1854) target = $region52
      $region51: #{forward.1} parent=47 // pred_region
        _
      $region52: #{forward.1} parent=47 // pred_fallthru
        _
      // Predicated region
      $region53: #{forward.1} parent=47 // pred_check
        %p1857 = pneg %p231
      $region54: #{forward.1} parent=47 // pred_check_branch
        %1859 = sbr.rel (%p1857) target = $region56
      $region55: #{forward.1} parent=47 // pred_region
        _
      $region56: #{forward.1} parent=47 // pred_fallthru
        _
    $region48: #{forward.1} parent=5 // pred_fallthru
      _
    %p1860 = scmp.le.s32.totalorder 2, %s15
    // Predicated region
    $region57: #{forward.1} parent=5 // pred_check
      %p1861 = pneg %p1860
    $region58: #{forward.1} parent=5 // pred_check_branch
      %1863 = sbr.rel (%p1861) target = $region60
    $region59: #{forward.1} parent=5 // pred_region
      %s1864 = ssub.s32 %s15, 2
      // Predicated region
      $region61: #{forward.1} parent=59 // pred_check
        %p1865 = pneg %p211
      $region62: #{forward.1} parent=59 // pred_check_branch
        %1867 = sbr.rel (%p1865) target = $region64
      $region63: #{forward.1} parent=59 // pred_region
        %p1868 = scmp.lt.s32.totalorder %s21, 1
        %s1869 = scalar_select %p1868, %s21, 1
        %s1870 = smul.addr %s1869, 8
        %s1871 = scalar_lea.vmem %s7, %s1870
      $region64: #{forward.1} parent=59 // pred_fallthru
        _
      // Predicated region
      $region65: #{forward.1} parent=59 // pred_check
        %p1872 = pneg %p237
      $region66: #{forward.1} parent=59 // pred_check_branch
        %1874 = sbr.rel (%p1872) target = $region68
      $region67: #{forward.1} parent=59 // pred_region
        %p1875 = scmp.lt.s32.totalorder %s21, 1
        %s1876 = scalar_select %p1875, %s21, 1
        %s1877 = smul.addr %s1876, 8
        %s1878 = scalar_lea.vmem %s8, %s1877
      $region68: #{forward.1} parent=59 // pred_fallthru
        _
    $region60: #{forward.1} parent=5 // pred_fallthru
      _
  $region6: #{forward.1} parent=0 // loop_footer
    %s19 = sadd.s32 1, %s15
  $region7: #{forward.1} parent=0 // loop_footer_branch
    %14 = sbr.rel target = $region3
  $region8: #{forward.1} parent=0 // loop_exit
    _

</llo_original>
